<compile_context>
chip_gen: v5e
topology: v5e:2x2
jax: 0.10.0
libtpu: 0.0.40
codegen_flags: <defaults>
</compile_context>

<pallas_src>
import functools

import jax
import jax.numpy as jnp
from jax.experimental import pallas as pl
from jax.experimental.pallas import tpu as pltpu


def _round_up(n, m):
    return ((n + m - 1) // m) * m


# ----------------------------------------------------------------------------
# Single fused kernel: num_layers tanh-RNN layers (h0 = 0) + final Linear.
# ----------------------------------------------------------------------------
def _fused_rnn_fc_kernel(x_ref, wih0_ref, whh0_ref, wcat_ref, b_ref,
                         wfc_ref, bfc_ref, out_ref, proj_ref, *, T, Bp, L):
    """
    x_ref    : (T*Bp, D)              time-major input, batch padded to Bp=8 rows
    wih0_ref : (D, Hp)                layer-0 input->hidden weight (transposed, lane-padded)
    whh0_ref : (Hp, Hp)               layer-0 hidden->hidden weight (transposed, padded)
    wcat_ref : (max(L-1,1), 2*Hp, Hp) layers 1..L-1 fused [[W_ih^T],[W_hh^T]] blocks
    b_ref    : (L, 1, Hp)             combined biases b_ih + b_hh per layer (padded)
    wfc_ref  : (Hp, Cp)               FC weight (transposed, padded)
    bfc_ref  : (1, Cp)                FC bias (padded)
    out_ref  : (Bp, Cp)               padded logits (lane-dense full-vreg store)
    proj_ref : (T, Bp, Hp)            VMEM scratch: hoisted layer-0 input projection
    """
    Hp = whh0_ref.shape[-1]

    # Hoisted layer-0 input projection + bias: ONE MXU matmul over all T timesteps,
    # entirely off the serial recurrence chain.
    proj = (jnp.dot(x_ref[...], wih0_ref[...], preferred_element_type=jnp.float32)
            + b_ref[0])                                     # (T*Bp, Hp)
    for t in range(T):
        proj_ref[t] = proj[t * Bp:(t + 1) * Bp, :]          # aligned (8,128) vreg stores

    # Wavefront schedule over the (layer, time) cell grid.  On anti-diagonal d the
    # active cells (l, t = d - l) read only state produced on diagonal d-1, so their
    # matmul -> tanh chains are independent and can overlap on the MXU/EUP.
    # NOTE: T and L are tiny & static here; for large T switch to lax.fori_loop.
    h = [jnp.zeros((Bp, Hp), jnp.float32) for _ in range(L)]
    for d in range(T + L - 1):
        new_h = {}
        for l in range(L):
            t = d - l
            if 0 <= t < T:
                if l == 0:
                    pre = proj_ref[t] + jnp.dot(
                        h[0], whh0_ref[...], preferred_element_type=jnp.float32)
                else:
                    # Fused next-layer projection + recurrence: one (8,256)@(256,128)
                    # MXU matmul per cell; no inter-layer VMEM slab round-trip.
                    inp = jnp.concatenate([h[l - 1], h[l]], axis=-1)   # (Bp, 2*Hp)
                    pre = jnp.dot(inp, wcat_ref[l - 1],
                                  preferred_element_type=jnp.float32) + b_ref[l]
                new_h[l] = jnp.tanh(pre)
        for l, v in new_h.items():        # commit only after all reads of the old state
            h[l] = v

    # Fused FC on the last layer's final hidden state; single lane-dense (8,128) store.
    out_ref[...] = (jnp.dot(h[L - 1], wfc_ref[...], preferred_element_type=jnp.float32)
                    + bfc_ref[...]).astype(out_ref.dtype)


def rnn_model_forward(x_btd, kp, num_classes):
    """x_btd: (B, T, D) batch-first input, as in the PyTorch module."""
    B, T, D = x_btd.shape
    L = kp["b"].shape[0]
    Hp = kp["whh0"].shape[-1]
    Cp = kp["wfc"].shape[-1]
    Bp = _round_up(B, 8)                                     # full sublane tile

    # Time-major + zero-pad batch to Bp rows so every recurrence tile is a full (8,128).
    x_tbd = jnp.transpose(x_btd, (1, 0, 2))                  # (T, B, D)
    x_tbd = jnp.pad(x_tbd, ((0, 0), (0, Bp - B), (0, 0)))
    x_flat = x_tbd.reshape(T * Bp, D)

    kernel = functools.partial(_fused_rnn_fc_kernel, T=T, Bp=Bp, L=L)
    out_pad = pl.pallas_call(
        kernel,
        out_shape=jax.ShapeDtypeStruct((Bp, Cp), jnp.float32),
        scratch_shapes=[pltpu.VMEM((T, Bp, Hp), jnp.float32)],
    )(x_flat, kp["wih0"], kp["whh0"], kp["wcat"], kp["b"], kp["wfc"], kp["bfc"])
    return out_pad[:B, :num_classes]


# ----------------------------------------------------------------------------
# Parameter init mirroring PyTorch's U(-1/sqrt(H), 1/sqrt(H)), plus packing
# into the padded / fused layout the kernel consumes.
# ----------------------------------------------------------------------------
def init_params(key, input_size, hidden_size, num_layers, num_classes):
    bound = 1.0 / (hidden_size ** 0.5)
    w_ih, w_hh, b_ih, b_hh = [], [], [], []
    for l in range(num_layers):
        d_in = input_size if l == 0 else hidden_size
        key, k1, k2, k3, k4 = jax.random.split(key, 5)
        w_ih.append(jax.random.uniform(k1, (hidden_size, d_in), jnp.float32, -bound, bound))
        w_hh.append(jax.random.uniform(k2, (hidden_size, hidden_size), jnp.float32,
                                       -bound, bound))
        b_ih.append(jax.random.uniform(k3, (hidden_size,), jnp.float32, -bound, bound))
        b_hh.append(jax.random.uniform(k4, (hidden_size,), jnp.float32, -bound, bound))
    key, k5, k6 = jax.random.split(key, 3)
    fc_w = jax.random.uniform(k5, (num_classes, hidden_size), jnp.float32, -bound, bound)
    fc_b = jax.random.uniform(k6, (num_classes,), jnp.float32, -bound, bound)
    return {"w_ih": w_ih, "w_hh": w_hh, "b_ih": b_ih, "b_hh": b_hh,
            "fc_w": fc_w, "fc_b": fc_b}


def pack_params(raw):
    w_ih, w_hh, b_ih, b_hh = raw["w_ih"], raw["w_hh"], raw["b_ih"], raw["b_hh"]
    L = len(w_ih)
    H = w_hh[0].shape[0]
    D = w_ih[0].shape[1]
    C = raw["fc_w"].shape[0]
    Hp = _round_up(H, 128)                                   # lane-dense hidden
    Cp = _round_up(C, 128)                                   # lane-dense logits

    def pad2(a, rows, cols):
        return jnp.zeros((rows, cols), jnp.float32).at[:a.shape[0], :a.shape[1]].set(a)

    wih0 = pad2(w_ih[0].T, D, Hp)                            # (D, Hp)
    whh0 = pad2(w_hh[0].T, Hp, Hp)                           # (Hp, Hp)

    if L > 1:
        wcat = jnp.stack(
            [jnp.concatenate([pad2(w_ih[l].T, Hp, Hp),
                              pad2(w_hh[l].T, Hp, Hp)], axis=0)   # (2*Hp, Hp)
             for l in range(1, L)], axis=0)                  # (L-1, 2*Hp, Hp)
    else:
        wcat = jnp.zeros((1, 2 * Hp, Hp), jnp.float32)       # unused dummy

    b = jnp.stack([pad2((b_ih[l] + b_hh[l])[None, :], 1, Hp) for l in range(L)],
                  axis=0)                                    # (L, 1, Hp)
    wfc = pad2(raw["fc_w"].T, Hp, Cp)                        # (Hp, Cp)
    bfc = pad2(raw["fc_b"][None, :], 1, Cp)                  # (1, Cp)
    return {"wih0": wih0, "whh0": whh0, "wcat": wcat, "b": b, "wfc": wfc, "bfc": bfc}


# ----------------------------------------------------------------------------
# Pure-JAX reference (PyTorch nn.RNN math) for a correctness check.
# ----------------------------------------------------------------------------
def reference_forward(x_btd, raw):
    B, T, D = x_btd.shape
    L = len(raw["w_ih"])
    H = raw["w_hh"][0].shape[0]
    seq = jnp.transpose(x_btd, (1, 0, 2))                    # (T, B, D)
    for l in range(L):
        h = jnp.zeros((B, H), jnp.float32)
        outs = []
        for t in range(T):
            h = jnp.tanh(seq[t] @ raw["w_ih"][l].T + raw["b_ih"][l]
                         + h @ raw["w_hh"][l].T + raw["b_hh"][l])
            outs.append(h)
        seq = jnp.stack(outs, axis=0)                        # (T, B, H)
    return seq[-1] @ raw["fc_w"].T + raw["fc_b"]             # (B, C)


if __name__ == "__main__":
    # Small shapes consistent with the module's forward: x is (B, T, input_size).
    B, T, INPUT_SIZE = 2, 8, 16
    HIDDEN_SIZE, NUM_LAYERS, NUM_CLASSES = 32, 3, 8

    key = jax.random.PRNGKey(0)
    key, kx = jax.random.split(key)
    x = jax.random.normal(kx, (B, T, INPUT_SIZE), jnp.float32)

    raw = init_params(key, INPUT_SIZE, HIDDEN_SIZE, NUM_LAYERS, NUM_CLASSES)
    kp = pack_params(raw)

    out = rnn_model_forward(x, kp, NUM_CLASSES)
    out = jax.block_until_ready(out)

    ref = reference_forward(x, raw)
    assert out.shape == (B, NUM_CLASSES)
    assert jnp.allclose(out, ref, atol=1e-4, rtol=1e-4), "mismatch vs JAX reference"

    print("KERNEL_OK")
</pallas_src>

<mosaic_0001>
module attributes {stable_mosaic.version = 11 : i64} {
  func.func @_fused_rnn_fc_kernel(%arg0: memref<64x16xf32, #tpu.memory_space<vmem>>, %arg1: memref<16x128xf32, #tpu.memory_space<vmem>>, %arg2: memref<128x128xf32, #tpu.memory_space<vmem>>, %arg3: memref<2x256x128xf32, #tpu.memory_space<vmem>>, %arg4: memref<3x1x128xf32, #tpu.memory_space<vmem>>, %arg5: memref<128x128xf32, #tpu.memory_space<vmem>>, %arg6: memref<1x128xf32, #tpu.memory_space<vmem>>, %arg7: memref<8x128xf32, #tpu.memory_space<vmem>>, %arg8: memref<8x8x128xf32, #tpu.memory_space<vmem>>) attributes {dimension_semantics = [], scalar_prefetch = 0 : i64, scratch_operands = 1 : i64, tpu.core_type = #tpu.core_type<tc>} {
    %c0 = arith.constant 0 : index
    %c0_0 = arith.constant 0 : index
    %0 = vector.load %arg0[%c0, %c0_0] : memref<64x16xf32, #tpu.memory_space<vmem>>, vector<64x16xf32>
    %c0_1 = arith.constant 0 : index
    %c0_2 = arith.constant 0 : index
    %1 = vector.load %arg1[%c0_1, %c0_2] : memref<16x128xf32, #tpu.memory_space<vmem>>, vector<16x128xf32>
    %cst = arith.constant dense<0.000000e+00> : vector<64x128xf32>
    %2 = tpu.matmul %0, %1, %cst {dimension_numbers = #tpu.dot_dimension_numbers<[1], [0], [0], [1], [0, 0, 1, 1], [], []>} : vector<64x16xf32>, vector<16x128xf32>, vector<64x128xf32> -> vector<64x128xf32>
    %c0_3 = arith.constant 0 : index
    %c0_4 = arith.constant 0 : index
    %c0_5 = arith.constant 0 : index
    %3 = vector.load %arg4[%c0_3, %c0_4, %c0_5] : memref<3x1x128xf32, #tpu.memory_space<vmem>>, vector<1x1x128xf32>
    %4 = vector.shape_cast %3 : vector<1x1x128xf32> to vector<1x128xf32>
    %5 = vector.broadcast %4 : vector<1x128xf32> to vector<64x128xf32>
    %6 = arith.addf %2, %5 : vector<64x128xf32>
    %7 = vector.extract_strided_slice %6 {offsets = [0, 0], sizes = [8, 128], strides = [1, 1]} : vector<64x128xf32> to vector<8x128xf32>
    %c0_6 = arith.constant 0 : index
    %c0_7 = arith.constant 0 : index
    %c0_8 = arith.constant 0 : index
    %8 = vector.load %arg8[%c0_6, %c0_7, %c0_8] : memref<8x8x128xf32, #tpu.memory_space<vmem>>, vector<1x8x128xf32>
    %9 = vector.shape_cast %8 : vector<1x8x128xf32> to vector<8x128xf32>
    %10 = vector.shape_cast %7 : vector<8x128xf32> to vector<1x8x128xf32>
    tpu.vector_store %arg8[%c0_6, %c0_7, %c0_8], %10 {strides = array<i32>} : memref<8x8x128xf32, #tpu.memory_space<vmem>>, vector<1x8x128xf32>,
    %11 = vector.extract_strided_slice %6 {offsets = [8, 0], sizes = [8, 128], strides = [1, 1]} : vector<64x128xf32> to vector<8x128xf32>
    %c1 = arith.constant 1 : index
    %c0_9 = arith.constant 0 : index
    %c0_10 = arith.constant 0 : index
    %12 = vector.load %arg8[%c1, %c0_9, %c0_10] : memref<8x8x128xf32, #tpu.memory_space<vmem>>, vector<1x8x128xf32>
    %13 = vector.shape_cast %12 : vector<1x8x128xf32> to vector<8x128xf32>
    %14 = vector.shape_cast %11 : vector<8x128xf32> to vector<1x8x128xf32>
    tpu.vector_store %arg8[%c1, %c0_9, %c0_10], %14 {strides = array<i32>} : memref<8x8x128xf32, #tpu.memory_space<vmem>>, vector<1x8x128xf32>,
    %15 = vector.extract_strided_slice %6 {offsets = [16, 0], sizes = [8, 128], strides = [1, 1]} : vector<64x128xf32> to vector<8x128xf32>
    %c2 = arith.constant 2 : index
    %c0_11 = arith.constant 0 : index
    %c0_12 = arith.constant 0 : index
    %16 = vector.load %arg8[%c2, %c0_11, %c0_12] : memref<8x8x128xf32, #tpu.memory_space<vmem>>, vector<1x8x128xf32>
    %17 = vector.shape_cast %16 : vector<1x8x128xf32> to vector<8x128xf32>
    %18 = vector.shape_cast %15 : vector<8x128xf32> to vector<1x8x128xf32>
    tpu.vector_store %arg8[%c2, %c0_11, %c0_12], %18 {strides = array<i32>} : memref<8x8x128xf32, #tpu.memory_space<vmem>>, vector<1x8x128xf32>,
    %19 = vector.extract_strided_slice %6 {offsets = [24, 0], sizes = [8, 128], strides = [1, 1]} : vector<64x128xf32> to vector<8x128xf32>
    %c3 = arith.constant 3 : index
    %c0_13 = arith.constant 0 : index
    %c0_14 = arith.constant 0 : index
    %20 = vector.load %arg8[%c3, %c0_13, %c0_14] : memref<8x8x128xf32, #tpu.memory_space<vmem>>, vector<1x8x128xf32>
    %21 = vector.shape_cast %20 : vector<1x8x128xf32> to vector<8x128xf32>
    %22 = vector.shape_cast %19 : vector<8x128xf32> to vector<1x8x128xf32>
    tpu.vector_store %arg8[%c3, %c0_13, %c0_14], %22 {strides = array<i32>} : memref<8x8x128xf32, #tpu.memory_space<vmem>>, vector<1x8x128xf32>,
    %23 = vector.extract_strided_slice %6 {offsets = [32, 0], sizes = [8, 128], strides = [1, 1]} : vector<64x128xf32> to vector<8x128xf32>
    %c4 = arith.constant 4 : index
    %c0_15 = arith.constant 0 : index
    %c0_16 = arith.constant 0 : index
    %24 = vector.load %arg8[%c4, %c0_15, %c0_16] : memref<8x8x128xf32, #tpu.memory_space<vmem>>, vector<1x8x128xf32>
    %25 = vector.shape_cast %24 : vector<1x8x128xf32> to vector<8x128xf32>
    %26 = vector.shape_cast %23 : vector<8x128xf32> to vector<1x8x128xf32>
    tpu.vector_store %arg8[%c4, %c0_15, %c0_16], %26 {strides = array<i32>} : memref<8x8x128xf32, #tpu.memory_space<vmem>>, vector<1x8x128xf32>,
    %27 = vector.extract_strided_slice %6 {offsets = [40, 0], sizes = [8, 128], strides = [1, 1]} : vector<64x128xf32> to vector<8x128xf32>
    %c5 = arith.constant 5 : index
    %c0_17 = arith.constant 0 : index
    %c0_18 = arith.constant 0 : index
    %28 = vector.load %arg8[%c5, %c0_17, %c0_18] : memref<8x8x128xf32, #tpu.memory_space<vmem>>, vector<1x8x128xf32>
    %29 = vector.shape_cast %28 : vector<1x8x128xf32> to vector<8x128xf32>
    %30 = vector.shape_cast %27 : vector<8x128xf32> to vector<1x8x128xf32>
    tpu.vector_store %arg8[%c5, %c0_17, %c0_18], %30 {strides = array<i32>} : memref<8x8x128xf32, #tpu.memory_space<vmem>>, vector<1x8x128xf32>,
    %31 = vector.extract_strided_slice %6 {offsets = [48, 0], sizes = [8, 128], strides = [1, 1]} : vector<64x128xf32> to vector<8x128xf32>
    %c6 = arith.constant 6 : index
    %c0_19 = arith.constant 0 : index
    %c0_20 = arith.constant 0 : index
    %32 = vector.load %arg8[%c6, %c0_19, %c0_20] : memref<8x8x128xf32, #tpu.memory_space<vmem>>, vector<1x8x128xf32>
    %33 = vector.shape_cast %32 : vector<1x8x128xf32> to vector<8x128xf32>
    %34 = vector.shape_cast %31 : vector<8x128xf32> to vector<1x8x128xf32>
    tpu.vector_store %arg8[%c6, %c0_19, %c0_20], %34 {strides = array<i32>} : memref<8x8x128xf32, #tpu.memory_space<vmem>>, vector<1x8x128xf32>,
    %35 = vector.extract_strided_slice %6 {offsets = [56, 0], sizes = [8, 128], strides = [1, 1]} : vector<64x128xf32> to vector<8x128xf32>
    %c7 = arith.constant 7 : index
    %c0_21 = arith.constant 0 : index
    %c0_22 = arith.constant 0 : index
    %36 = vector.load %arg8[%c7, %c0_21, %c0_22] : memref<8x8x128xf32, #tpu.memory_space<vmem>>, vector<1x8x128xf32>
    %37 = vector.shape_cast %36 : vector<1x8x128xf32> to vector<8x128xf32>
    %38 = vector.shape_cast %35 : vector<8x128xf32> to vector<1x8x128xf32>
    tpu.vector_store %arg8[%c7, %c0_21, %c0_22], %38 {strides = array<i32>} : memref<8x8x128xf32, #tpu.memory_space<vmem>>, vector<1x8x128xf32>,
    %cst_23 = arith.constant 0.000000e+00 : f32
    %39 = vector.broadcast %cst_23 : f32 to vector<8x128xf32>
    %cst_24 = arith.constant 0.000000e+00 : f32
    %40 = vector.broadcast %cst_24 : f32 to vector<8x128xf32>
    %cst_25 = arith.constant 0.000000e+00 : f32
    %41 = vector.broadcast %cst_25 : f32 to vector<8x128xf32>
    %c0_26 = arith.constant 0 : index
    %c0_27 = arith.constant 0 : index
    %c0_28 = arith.constant 0 : index
    %42 = vector.load %arg8[%c0_26, %c0_27, %c0_28] : memref<8x8x128xf32, #tpu.memory_space<vmem>>, vector<1x8x128xf32>
    %43 = vector.shape_cast %42 : vector<1x8x128xf32> to vector<8x128xf32>
    %c0_29 = arith.constant 0 : index
    %c0_30 = arith.constant 0 : index
    %44 = vector.load %arg2[%c0_29, %c0_30] : memref<128x128xf32, #tpu.memory_space<vmem>>, vector<128x128xf32>
    %cst_31 = arith.constant dense<0.000000e+00> : vector<8x128xf32>
    %45 = tpu.matmul %39, %44, %cst_31 {dimension_numbers = #tpu.dot_dimension_numbers<[1], [0], [0], [1], [0, 0, 1, 1], [], []>} : vector<8x128xf32>, vector<128x128xf32>, vector<8x128xf32> -> vector<8x128xf32>
    %46 = arith.addf %43, %45 : vector<8x128xf32>
    %47 = math.tanh %46 : vector<8x128xf32>
    %c1_32 = arith.constant 1 : index
    %c0_33 = arith.constant 0 : index
    %c0_34 = arith.constant 0 : index
    %48 = vector.load %arg8[%c1_32, %c0_33, %c0_34] : memref<8x8x128xf32, #tpu.memory_space<vmem>>, vector<1x8x128xf32>
    %49 = vector.shape_cast %48 : vector<1x8x128xf32> to vector<8x128xf32>
    %c0_35 = arith.constant 0 : index
    %c0_36 = arith.constant 0 : index
    %50 = vector.load %arg2[%c0_35, %c0_36] : memref<128x128xf32, #tpu.memory_space<vmem>>, vector<128x128xf32>
    %cst_37 = arith.constant dense<0.000000e+00> : vector<8x128xf32>
    %51 = tpu.matmul %47, %50, %cst_37 {dimension_numbers = #tpu.dot_dimension_numbers<[1], [0], [0], [1], [0, 0, 1, 1], [], []>} : vector<8x128xf32>, vector<128x128xf32>, vector<8x128xf32> -> vector<8x128xf32>
    %52 = arith.addf %49, %51 : vector<8x128xf32>
    %53 = math.tanh %52 : vector<8x128xf32>
    %54 = tpu.concatenate %47, %40 in 1 : vector<8x128xf32>, vector<8x128xf32> -> vector<8x256xf32>
    %c0_38 = arith.constant 0 : index
    %c0_39 = arith.constant 0 : index
    %c0_40 = arith.constant 0 : index
    %55 = vector.load %arg3[%c0_38, %c0_39, %c0_40] : memref<2x256x128xf32, #tpu.memory_space<vmem>>, vector<1x256x128xf32>
    %56 = vector.shape_cast %55 : vector<1x256x128xf32> to vector<256x128xf32>
    %cst_41 = arith.constant dense<0.000000e+00> : vector<8x128xf32>
    %57 = tpu.matmul %54, %56, %cst_41 {dimension_numbers = #tpu.dot_dimension_numbers<[1], [0], [0], [1], [0, 0, 1, 1], [], []>} : vector<8x256xf32>, vector<256x128xf32>, vector<8x128xf32> -> vector<8x128xf32>
    %c1_42 = arith.constant 1 : index
    %c0_43 = arith.constant 0 : index
    %c0_44 = arith.constant 0 : index
    %58 = vector.load %arg4[%c1_42, %c0_43, %c0_44] : memref<3x1x128xf32, #tpu.memory_space<vmem>>, vector<1x1x128xf32>
    %59 = vector.shape_cast %58 : vector<1x1x128xf32> to vector<1x128xf32>
    %60 = vector.broadcast %59 : vector<1x128xf32> to vector<8x128xf32>
    %61 = arith.addf %57, %60 : vector<8x128xf32>
    %62 = math.tanh %61 : vector<8x128xf32>
    %c2_45 = arith.constant 2 : index
    %c0_46 = arith.constant 0 : index
    %c0_47 = arith.constant 0 : index
    %63 = vector.load %arg8[%c2_45, %c0_46, %c0_47] : memref<8x8x128xf32, #tpu.memory_space<vmem>>, vector<1x8x128xf32>
    %64 = vector.shape_cast %63 : vector<1x8x128xf32> to vector<8x128xf32>
    %c0_48 = arith.constant 0 : index
    %c0_49 = arith.constant 0 : index
    %65 = vector.load %arg2[%c0_48, %c0_49] : memref<128x128xf32, #tpu.memory_space<vmem>>, vector<128x128xf32>
    %cst_50 = arith.constant dense<0.000000e+00> : vector<8x128xf32>
    %66 = tpu.matmul %53, %65, %cst_50 {dimension_numbers = #tpu.dot_dimension_numbers<[1], [0], [0], [1], [0, 0, 1, 1], [], []>} : vector<8x128xf32>, vector<128x128xf32>, vector<8x128xf32> -> vector<8x128xf32>
    %67 = arith.addf %64, %66 : vector<8x128xf32>
    %68 = math.tanh %67 : vector<8x128xf32>
    %69 = tpu.concatenate %53, %62 in 1 : vector<8x128xf32>, vector<8x128xf32> -> vector<8x256xf32>
    %c0_51 = arith.constant 0 : index
    %c0_52 = arith.constant 0 : index
    %c0_53 = arith.constant 0 : index
    %70 = vector.load %arg3[%c0_51, %c0_52, %c0_53] : memref<2x256x128xf32, #tpu.memory_space<vmem>>, vector<1x256x128xf32>
    %71 = vector.shape_cast %70 : vector<1x256x128xf32> to vector<256x128xf32>
    %cst_54 = arith.constant dense<0.000000e+00> : vector<8x128xf32>
    %72 = tpu.matmul %69, %71, %cst_54 {dimension_numbers = #tpu.dot_dimension_numbers<[1], [0], [0], [1], [0, 0, 1, 1], [], []>} : vector<8x256xf32>, vector<256x128xf32>, vector<8x128xf32> -> vector<8x128xf32>
    %c1_55 = arith.constant 1 : index
    %c0_56 = arith.constant 0 : index
    %c0_57 = arith.constant 0 : index
    %73 = vector.load %arg4[%c1_55, %c0_56, %c0_57] : memref<3x1x128xf32, #tpu.memory_space<vmem>>, vector<1x1x128xf32>
    %74 = vector.shape_cast %73 : vector<1x1x128xf32> to vector<1x128xf32>
    %75 = vector.broadcast %74 : vector<1x128xf32> to vector<8x128xf32>
    %76 = arith.addf %72, %75 : vector<8x128xf32>
    %77 = math.tanh %76 : vector<8x128xf32>
    %78 = tpu.concatenate %62, %41 in 1 : vector<8x128xf32>, vector<8x128xf32> -> vector<8x256xf32>
    %c1_58 = arith.constant 1 : index
    %c0_59 = arith.constant 0 : index
    %c0_60 = arith.constant 0 : index
    %79 = vector.load %arg3[%c1_58, %c0_59, %c0_60] : memref<2x256x128xf32, #tpu.memory_space<vmem>>, vector<1x256x128xf32>
    %80 = vector.shape_cast %79 : vector<1x256x128xf32> to vector<256x128xf32>
    %cst_61 = arith.constant dense<0.000000e+00> : vector<8x128xf32>
    %81 = tpu.matmul %78, %80, %cst_61 {dimension_numbers = #tpu.dot_dimension_numbers<[1], [0], [0], [1], [0, 0, 1, 1], [], []>} : vector<8x256xf32>, vector<256x128xf32>, vector<8x128xf32> -> vector<8x128xf32>
    %c2_62 = arith.constant 2 : index
    %c0_63 = arith.constant 0 : index
    %c0_64 = arith.constant 0 : index
    %82 = vector.load %arg4[%c2_62, %c0_63, %c0_64] : memref<3x1x128xf32, #tpu.memory_space<vmem>>, vector<1x1x128xf32>
    %83 = vector.shape_cast %82 : vector<1x1x128xf32> to vector<1x128xf32>
    %84 = vector.broadcast %83 : vector<1x128xf32> to vector<8x128xf32>
    %85 = arith.addf %81, %84 : vector<8x128xf32>
    %86 = math.tanh %85 : vector<8x128xf32>
    %c3_65 = arith.constant 3 : index
    %c0_66 = arith.constant 0 : index
    %c0_67 = arith.constant 0 : index
    %87 = vector.load %arg8[%c3_65, %c0_66, %c0_67] : memref<8x8x128xf32, #tpu.memory_space<vmem>>, vector<1x8x128xf32>
    %88 = vector.shape_cast %87 : vector<1x8x128xf32> to vector<8x128xf32>
    %c0_68 = arith.constant 0 : index
    %c0_69 = arith.constant 0 : index
    %89 = vector.load %arg2[%c0_68, %c0_69] : memref<128x128xf32, #tpu.memory_space<vmem>>, vector<128x128xf32>
    %cst_70 = arith.constant dense<0.000000e+00> : vector<8x128xf32>
    %90 = tpu.matmul %68, %89, %cst_70 {dimension_numbers = #tpu.dot_dimension_numbers<[1], [0], [0], [1], [0, 0, 1, 1], [], []>} : vector<8x128xf32>, vector<128x128xf32>, vector<8x128xf32> -> vector<8x128xf32>
    %91 = arith.addf %88, %90 : vector<8x128xf32>
    %92 = math.tanh %91 : vector<8x128xf32>
    %93 = tpu.concatenate %68, %77 in 1 : vector<8x128xf32>, vector<8x128xf32> -> vector<8x256xf32>
    %c0_71 = arith.constant 0 : index
    %c0_72 = arith.constant 0 : index
    %c0_73 = arith.constant 0 : index
    %94 = vector.load %arg3[%c0_71, %c0_72, %c0_73] : memref<2x256x128xf32, #tpu.memory_space<vmem>>, vector<1x256x128xf32>
    %95 = vector.shape_cast %94 : vector<1x256x128xf32> to vector<256x128xf32>
    %cst_74 = arith.constant dense<0.000000e+00> : vector<8x128xf32>
    %96 = tpu.matmul %93, %95, %cst_74 {dimension_numbers = #tpu.dot_dimension_numbers<[1], [0], [0], [1], [0, 0, 1, 1], [], []>} : vector<8x256xf32>, vector<256x128xf32>, vector<8x128xf32> -> vector<8x128xf32>
    %c1_75 = arith.constant 1 : index
    %c0_76 = arith.constant 0 : index
    %c0_77 = arith.constant 0 : index
    %97 = vector.load %arg4[%c1_75, %c0_76, %c0_77] : memref<3x1x128xf32, #tpu.memory_space<vmem>>, vector<1x1x128xf32>
    %98 = vector.shape_cast %97 : vector<1x1x128xf32> to vector<1x128xf32>
    %99 = vector.broadcast %98 : vector<1x128xf32> to vector<8x128xf32>
    %100 = arith.addf %96, %99 : vector<8x128xf32>
    %101 = math.tanh %100 : vector<8x128xf32>
    %102 = tpu.concatenate %77, %86 in 1 : vector<8x128xf32>, vector<8x128xf32> -> vector<8x256xf32>
    %c1_78 = arith.constant 1 : index
    %c0_79 = arith.constant 0 : index
    %c0_80 = arith.constant 0 : index
    %103 = vector.load %arg3[%c1_78, %c0_79, %c0_80] : memref<2x256x128xf32, #tpu.memory_space<vmem>>, vector<1x256x128xf32>
    %104 = vector.shape_cast %103 : vector<1x256x128xf32> to vector<256x128xf32>
    %cst_81 = arith.constant dense<0.000000e+00> : vector<8x128xf32>
    %105 = tpu.matmul %102, %104, %cst_81 {dimension_numbers = #tpu.dot_dimension_numbers<[1], [0], [0], [1], [0, 0, 1, 1], [], []>} : vector<8x256xf32>, vector<256x128xf32>, vector<8x128xf32> -> vector<8x128xf32>
    %c2_82 = arith.constant 2 : index
    %c0_83 = arith.constant 0 : index
    %c0_84 = arith.constant 0 : index
    %106 = vector.load %arg4[%c2_82, %c0_83, %c0_84] : memref<3x1x128xf32, #tpu.memory_space<vmem>>, vector<1x1x128xf32>
    %107 = vector.shape_cast %106 : vector<1x1x128xf32> to vector<1x128xf32>
    %108 = vector.broadcast %107 : vector<1x128xf32> to vector<8x128xf32>
    %109 = arith.addf %105, %108 : vector<8x128xf32>
    %110 = math.tanh %109 : vector<8x128xf32>
    %c4_85 = arith.constant 4 : index
    %c0_86 = arith.constant 0 : index
    %c0_87 = arith.constant 0 : index
    %111 = vector.load %arg8[%c4_85, %c0_86, %c0_87] : memref<8x8x128xf32, #tpu.memory_space<vmem>>, vector<1x8x128xf32>
    %112 = vector.shape_cast %111 : vector<1x8x128xf32> to vector<8x128xf32>
    %c0_88 = arith.constant 0 : index
    %c0_89 = arith.constant 0 : index
    %113 = vector.load %arg2[%c0_88, %c0_89] : memref<128x128xf32, #tpu.memory_space<vmem>>, vector<128x128xf32>
    %cst_90 = arith.constant dense<0.000000e+00> : vector<8x128xf32>
    %114 = tpu.matmul %92, %113, %cst_90 {dimension_numbers = #tpu.dot_dimension_numbers<[1], [0], [0], [1], [0, 0, 1, 1], [], []>} : vector<8x128xf32>, vector<128x128xf32>, vector<8x128xf32> -> vector<8x128xf32>
    %115 = arith.addf %112, %114 : vector<8x128xf32>
    %116 = math.tanh %115 : vector<8x128xf32>
    %117 = tpu.concatenate %92, %101 in 1 : vector<8x128xf32>, vector<8x128xf32> -> vector<8x256xf32>
    %c0_91 = arith.constant 0 : index
    %c0_92 = arith.constant 0 : index
    %c0_93 = arith.constant 0 : index
    %118 = vector.load %arg3[%c0_91, %c0_92, %c0_93] : memref<2x256x128xf32, #tpu.memory_space<vmem>>, vector<1x256x128xf32>
    %119 = vector.shape_cast %118 : vector<1x256x128xf32> to vector<256x128xf32>
    %cst_94 = arith.constant dense<0.000000e+00> : vector<8x128xf32>
    %120 = tpu.matmul %117, %119, %cst_94 {dimension_numbers = #tpu.dot_dimension_numbers<[1], [0], [0], [1], [0, 0, 1, 1], [], []>} : vector<8x256xf32>, vector<256x128xf32>, vector<8x128xf32> -> vector<8x128xf32>
    %c1_95 = arith.constant 1 : index
    %c0_96 = arith.constant 0 : index
    %c0_97 = arith.constant 0 : index
    %121 = vector.load %arg4[%c1_95, %c0_96, %c0_97] : memref<3x1x128xf32, #tpu.memory_space<vmem>>, vector<1x1x128xf32>
    %122 = vector.shape_cast %121 : vector<1x1x128xf32> to vector<1x128xf32>
    %123 = vector.broadcast %122 : vector<1x128xf32> to vector<8x128xf32>
    %124 = arith.addf %120, %123 : vector<8x128xf32>
    %125 = math.tanh %124 : vector<8x128xf32>
    %126 = tpu.concatenate %101, %110 in 1 : vector<8x128xf32>, vector<8x128xf32> -> vector<8x256xf32>
    %c1_98 = arith.constant 1 : index
    %c0_99 = arith.constant 0 : index
    %c0_100 = arith.constant 0 : index
    %127 = vector.load %arg3[%c1_98, %c0_99, %c0_100] : memref<2x256x128xf32, #tpu.memory_space<vmem>>, vector<1x256x128xf32>
    %128 = vector.shape_cast %127 : vector<1x256x128xf32> to vector<256x128xf32>
    %cst_101 = arith.constant dense<0.000000e+00> : vector<8x128xf32>
    %129 = tpu.matmul %126, %128, %cst_101 {dimension_numbers = #tpu.dot_dimension_numbers<[1], [0], [0], [1], [0, 0, 1, 1], [], []>} : vector<8x256xf32>, vector<256x128xf32>, vector<8x128xf32> -> vector<8x128xf32>
    %c2_102 = arith.constant 2 : index
    %c0_103 = arith.constant 0 : index
    %c0_104 = arith.constant 0 : index
    %130 = vector.load %arg4[%c2_102, %c0_103, %c0_104] : memref<3x1x128xf32, #tpu.memory_space<vmem>>, vector<1x1x128xf32>
    %131 = vector.shape_cast %130 : vector<1x1x128xf32> to vector<1x128xf32>
    %132 = vector.broadcast %131 : vector<1x128xf32> to vector<8x128xf32>
    %133 = arith.addf %129, %132 : vector<8x128xf32>
    %134 = math.tanh %133 : vector<8x128xf32>
    %c5_105 = arith.constant 5 : index
    %c0_106 = arith.constant 0 : index
    %c0_107 = arith.constant 0 : index
    %135 = vector.load %arg8[%c5_105, %c0_106, %c0_107] : memref<8x8x128xf32, #tpu.memory_space<vmem>>, vector<1x8x128xf32>
    %136 = vector.shape_cast %135 : vector<1x8x128xf32> to vector<8x128xf32>
    %c0_108 = arith.constant 0 : index
    %c0_109 = arith.constant 0 : index
    %137 = vector.load %arg2[%c0_108, %c0_109] : memref<128x128xf32, #tpu.memory_space<vmem>>, vector<128x128xf32>
    %cst_110 = arith.constant dense<0.000000e+00> : vector<8x128xf32>
    %138 = tpu.matmul %116, %137, %cst_110 {dimension_numbers = #tpu.dot_dimension_numbers<[1], [0], [0], [1], [0, 0, 1, 1], [], []>} : vector<8x128xf32>, vector<128x128xf32>, vector<8x128xf32> -> vector<8x128xf32>
    %139 = arith.addf %136, %138 : vector<8x128xf32>
    %140 = math.tanh %139 : vector<8x128xf32>
    %141 = tpu.concatenate %116, %125 in 1 : vector<8x128xf32>, vector<8x128xf32> -> vector<8x256xf32>
    %c0_111 = arith.constant 0 : index
    %c0_112 = arith.constant 0 : index
    %c0_113 = arith.constant 0 : index
    %142 = vector.load %arg3[%c0_111, %c0_112, %c0_113] : memref<2x256x128xf32, #tpu.memory_space<vmem>>, vector<1x256x128xf32>
    %143 = vector.shape_cast %142 : vector<1x256x128xf32> to vector<256x128xf32>
    %cst_114 = arith.constant dense<0.000000e+00> : vector<8x128xf32>
    %144 = tpu.matmul %141, %143, %cst_114 {dimension_numbers = #tpu.dot_dimension_numbers<[1], [0], [0], [1], [0, 0, 1, 1], [], []>} : vector<8x256xf32>, vector<256x128xf32>, vector<8x128xf32> -> vector<8x128xf32>
    %c1_115 = arith.constant 1 : index
    %c0_116 = arith.constant 0 : index
    %c0_117 = arith.constant 0 : index
    %145 = vector.load %arg4[%c1_115, %c0_116, %c0_117] : memref<3x1x128xf32, #tpu.memory_space<vmem>>, vector<1x1x128xf32>
    %146 = vector.shape_cast %145 : vector<1x1x128xf32> to vector<1x128xf32>
    %147 = vector.broadcast %146 : vector<1x128xf32> to vector<8x128xf32>
    %148 = arith.addf %144, %147 : vector<8x128xf32>
    %149 = math.tanh %148 : vector<8x128xf32>
    %150 = tpu.concatenate %125, %134 in 1 : vector<8x128xf32>, vector<8x128xf32> -> vector<8x256xf32>
    %c1_118 = arith.constant 1 : index
    %c0_119 = arith.constant 0 : index
    %c0_120 = arith.constant 0 : index
    %151 = vector.load %arg3[%c1_118, %c0_119, %c0_120] : memref<2x256x128xf32, #tpu.memory_space<vmem>>, vector<1x256x128xf32>
    %152 = vector.shape_cast %151 : vector<1x256x128xf32> to vector<256x128xf32>
    %cst_121 = arith.constant dense<0.000000e+00> : vector<8x128xf32>
    %153 = tpu.matmul %150, %152, %cst_121 {dimension_numbers = #tpu.dot_dimension_numbers<[1], [0], [0], [1], [0, 0, 1, 1], [], []>} : vector<8x256xf32>, vector<256x128xf32>, vector<8x128xf32> -> vector<8x128xf32>
    %c2_122 = arith.constant 2 : index
    %c0_123 = arith.constant 0 : index
    %c0_124 = arith.constant 0 : index
    %154 = vector.load %arg4[%c2_122, %c0_123, %c0_124] : memref<3x1x128xf32, #tpu.memory_space<vmem>>, vector<1x1x128xf32>
    %155 = vector.shape_cast %154 : vector<1x1x128xf32> to vector<1x128xf32>
    %156 = vector.broadcast %155 : vector<1x128xf32> to vector<8x128xf32>
    %157 = arith.addf %153, %156 : vector<8x128xf32>
    %158 = math.tanh %157 : vector<8x128xf32>
    %c6_125 = arith.constant 6 : index
    %c0_126 = arith.constant 0 : index
    %c0_127 = arith.constant 0 : index
    %159 = vector.load %arg8[%c6_125, %c0_126, %c0_127] : memref<8x8x128xf32, #tpu.memory_space<vmem>>, vector<1x8x128xf32>
    %160 = vector.shape_cast %159 : vector<1x8x128xf32> to vector<8x128xf32>
    %c0_128 = arith.constant 0 : index
    %c0_129 = arith.constant 0 : index
    %161 = vector.load %arg2[%c0_128, %c0_129] : memref<128x128xf32, #tpu.memory_space<vmem>>, vector<128x128xf32>
    %cst_130 = arith.constant dense<0.000000e+00> : vector<8x128xf32>
    %162 = tpu.matmul %140, %161, %cst_130 {dimension_numbers = #tpu.dot_dimension_numbers<[1], [0], [0], [1], [0, 0, 1, 1], [], []>} : vector<8x128xf32>, vector<128x128xf32>, vector<8x128xf32> -> vector<8x128xf32>
    %163 = arith.addf %160, %162 : vector<8x128xf32>
    %164 = math.tanh %163 : vector<8x128xf32>
    %165 = tpu.concatenate %140, %149 in 1 : vector<8x128xf32>, vector<8x128xf32> -> vector<8x256xf32>
    %c0_131 = arith.constant 0 : index
    %c0_132 = arith.constant 0 : index
    %c0_133 = arith.constant 0 : index
    %166 = vector.load %arg3[%c0_131, %c0_132, %c0_133] : memref<2x256x128xf32, #tpu.memory_space<vmem>>, vector<1x256x128xf32>
    %167 = vector.shape_cast %166 : vector<1x256x128xf32> to vector<256x128xf32>
    %cst_134 = arith.constant dense<0.000000e+00> : vector<8x128xf32>
    %168 = tpu.matmul %165, %167, %cst_134 {dimension_numbers = #tpu.dot_dimension_numbers<[1], [0], [0], [1], [0, 0, 1, 1], [], []>} : vector<8x256xf32>, vector<256x128xf32>, vector<8x128xf32> -> vector<8x128xf32>
    %c1_135 = arith.constant 1 : index
    %c0_136 = arith.constant 0 : index
    %c0_137 = arith.constant 0 : index
    %169 = vector.load %arg4[%c1_135, %c0_136, %c0_137] : memref<3x1x128xf32, #tpu.memory_space<vmem>>, vector<1x1x128xf32>
    %170 = vector.shape_cast %169 : vector<1x1x128xf32> to vector<1x128xf32>
    %171 = vector.broadcast %170 : vector<1x128xf32> to vector<8x128xf32>
    %172 = arith.addf %168, %171 : vector<8x128xf32>
    %173 = math.tanh %172 : vector<8x128xf32>
    %174 = tpu.concatenate %149, %158 in 1 : vector<8x128xf32>, vector<8x128xf32> -> vector<8x256xf32>
    %c1_138 = arith.constant 1 : index
    %c0_139 = arith.constant 0 : index
    %c0_140 = arith.constant 0 : index
    %175 = vector.load %arg3[%c1_138, %c0_139, %c0_140] : memref<2x256x128xf32, #tpu.memory_space<vmem>>, vector<1x256x128xf32>
    %176 = vector.shape_cast %175 : vector<1x256x128xf32> to vector<256x128xf32>
    %cst_141 = arith.constant dense<0.000000e+00> : vector<8x128xf32>
    %177 = tpu.matmul %174, %176, %cst_141 {dimension_numbers = #tpu.dot_dimension_numbers<[1], [0], [0], [1], [0, 0, 1, 1], [], []>} : vector<8x256xf32>, vector<256x128xf32>, vector<8x128xf32> -> vector<8x128xf32>
    %c2_142 = arith.constant 2 : index
    %c0_143 = arith.constant 0 : index
    %c0_144 = arith.constant 0 : index
    %178 = vector.load %arg4[%c2_142, %c0_143, %c0_144] : memref<3x1x128xf32, #tpu.memory_space<vmem>>, vector<1x1x128xf32>
    %179 = vector.shape_cast %178 : vector<1x1x128xf32> to vector<1x128xf32>
    %180 = vector.broadcast %179 : vector<1x128xf32> to vector<8x128xf32>
    %181 = arith.addf %177, %180 : vector<8x128xf32>
    %182 = math.tanh %181 : vector<8x128xf32>
    %c7_145 = arith.constant 7 : index
    %c0_146 = arith.constant 0 : index
    %c0_147 = arith.constant 0 : index
    %183 = vector.load %arg8[%c7_145, %c0_146, %c0_147] : memref<8x8x128xf32, #tpu.memory_space<vmem>>, vector<1x8x128xf32>
    %184 = vector.shape_cast %183 : vector<1x8x128xf32> to vector<8x128xf32>
    %c0_148 = arith.constant 0 : index
    %c0_149 = arith.constant 0 : index
    %185 = vector.load %arg2[%c0_148, %c0_149] : memref<128x128xf32, #tpu.memory_space<vmem>>, vector<128x128xf32>
    %cst_150 = arith.constant dense<0.000000e+00> : vector<8x128xf32>
    %186 = tpu.matmul %164, %185, %cst_150 {dimension_numbers = #tpu.dot_dimension_numbers<[1], [0], [0], [1], [0, 0, 1, 1], [], []>} : vector<8x128xf32>, vector<128x128xf32>, vector<8x128xf32> -> vector<8x128xf32>
    %187 = arith.addf %184, %186 : vector<8x128xf32>
    %188 = math.tanh %187 : vector<8x128xf32>
    %189 = tpu.concatenate %164, %173 in 1 : vector<8x128xf32>, vector<8x128xf32> -> vector<8x256xf32>
    %c0_151 = arith.constant 0 : index
    %c0_152 = arith.constant 0 : index
    %c0_153 = arith.constant 0 : index
    %190 = vector.load %arg3[%c0_151, %c0_152, %c0_153] : memref<2x256x128xf32, #tpu.memory_space<vmem>>, vector<1x256x128xf32>
    %191 = vector.shape_cast %190 : vector<1x256x128xf32> to vector<256x128xf32>
    %cst_154 = arith.constant dense<0.000000e+00> : vector<8x128xf32>
    %192 = tpu.matmul %189, %191, %cst_154 {dimension_numbers = #tpu.dot_dimension_numbers<[1], [0], [0], [1], [0, 0, 1, 1], [], []>} : vector<8x256xf32>, vector<256x128xf32>, vector<8x128xf32> -> vector<8x128xf32>
    %c1_155 = arith.constant 1 : index
    %c0_156 = arith.constant 0 : index
    %c0_157 = arith.constant 0 : index
    %193 = vector.load %arg4[%c1_155, %c0_156, %c0_157] : memref<3x1x128xf32, #tpu.memory_space<vmem>>, vector<1x1x128xf32>
    %194 = vector.shape_cast %193 : vector<1x1x128xf32> to vector<1x128xf32>
    %195 = vector.broadcast %194 : vector<1x128xf32> to vector<8x128xf32>
    %196 = arith.addf %192, %195 : vector<8x128xf32>
    %197 = math.tanh %196 : vector<8x128xf32>
    %198 = tpu.concatenate %173, %182 in 1 : vector<8x128xf32>, vector<8x128xf32> -> vector<8x256xf32>
    %c1_158 = arith.constant 1 : index
    %c0_159 = arith.constant 0 : index
    %c0_160 = arith.constant 0 : index
    %199 = vector.load %arg3[%c1_158, %c0_159, %c0_160] : memref<2x256x128xf32, #tpu.memory_space<vmem>>, vector<1x256x128xf32>
    %200 = vector.shape_cast %199 : vector<1x256x128xf32> to vector<256x128xf32>
    %cst_161 = arith.constant dense<0.000000e+00> : vector<8x128xf32>
    %201 = tpu.matmul %198, %200, %cst_161 {dimension_numbers = #tpu.dot_dimension_numbers<[1], [0], [0], [1], [0, 0, 1, 1], [], []>} : vector<8x256xf32>, vector<256x128xf32>, vector<8x128xf32> -> vector<8x128xf32>
    %c2_162 = arith.constant 2 : index
    %c0_163 = arith.constant 0 : index
    %c0_164 = arith.constant 0 : index
    %202 = vector.load %arg4[%c2_162, %c0_163, %c0_164] : memref<3x1x128xf32, #tpu.memory_space<vmem>>, vector<1x1x128xf32>
    %203 = vector.shape_cast %202 : vector<1x1x128xf32> to vector<1x128xf32>
    %204 = vector.broadcast %203 : vector<1x128xf32> to vector<8x128xf32>
    %205 = arith.addf %201, %204 : vector<8x128xf32>
    %206 = math.tanh %205 : vector<8x128xf32>
    %207 = tpu.concatenate %188, %197 in 1 : vector<8x128xf32>, vector<8x128xf32> -> vector<8x256xf32>
    %c0_165 = arith.constant 0 : index
    %c0_166 = arith.constant 0 : index
    %c0_167 = arith.constant 0 : index
    %208 = vector.load %arg3[%c0_165, %c0_166, %c0_167] : memref<2x256x128xf32, #tpu.memory_space<vmem>>, vector<1x256x128xf32>
    %209 = vector.shape_cast %208 : vector<1x256x128xf32> to vector<256x128xf32>
    %cst_168 = arith.constant dense<0.000000e+00> : vector<8x128xf32>
    %210 = tpu.matmul %207, %209, %cst_168 {dimension_numbers = #tpu.dot_dimension_numbers<[1], [0], [0], [1], [0, 0, 1, 1], [], []>} : vector<8x256xf32>, vector<256x128xf32>, vector<8x128xf32> -> vector<8x128xf32>
    %c1_169 = arith.constant 1 : index
    %c0_170 = arith.constant 0 : index
    %c0_171 = arith.constant 0 : index
    %211 = vector.load %arg4[%c1_169, %c0_170, %c0_171] : memref<3x1x128xf32, #tpu.memory_space<vmem>>, vector<1x1x128xf32>
    %212 = vector.shape_cast %211 : vector<1x1x128xf32> to vector<1x128xf32>
    %213 = vector.broadcast %212 : vector<1x128xf32> to vector<8x128xf32>
    %214 = arith.addf %210, %213 : vector<8x128xf32>
    %215 = math.tanh %214 : vector<8x128xf32>
    %216 = tpu.concatenate %197, %206 in 1 : vector<8x128xf32>, vector<8x128xf32> -> vector<8x256xf32>
    %c1_172 = arith.constant 1 : index
    %c0_173 = arith.constant 0 : index
    %c0_174 = arith.constant 0 : index
    %217 = vector.load %arg3[%c1_172, %c0_173, %c0_174] : memref<2x256x128xf32, #tpu.memory_space<vmem>>, vector<1x256x128xf32>
    %218 = vector.shape_cast %217 : vector<1x256x128xf32> to vector<256x128xf32>
    %cst_175 = arith.constant dense<0.000000e+00> : vector<8x128xf32>
    %219 = tpu.matmul %216, %218, %cst_175 {dimension_numbers = #tpu.dot_dimension_numbers<[1], [0], [0], [1], [0, 0, 1, 1], [], []>} : vector<8x256xf32>, vector<256x128xf32>, vector<8x128xf32> -> vector<8x128xf32>
    %c2_176 = arith.constant 2 : index
    %c0_177 = arith.constant 0 : index
    %c0_178 = arith.constant 0 : index
    %220 = vector.load %arg4[%c2_176, %c0_177, %c0_178] : memref<3x1x128xf32, #tpu.memory_space<vmem>>, vector<1x1x128xf32>
    %221 = vector.shape_cast %220 : vector<1x1x128xf32> to vector<1x128xf32>
    %222 = vector.broadcast %221 : vector<1x128xf32> to vector<8x128xf32>
    %223 = arith.addf %219, %222 : vector<8x128xf32>
    %224 = math.tanh %223 : vector<8x128xf32>
    %225 = tpu.concatenate %215, %224 in 1 : vector<8x128xf32>, vector<8x128xf32> -> vector<8x256xf32>
    %c1_179 = arith.constant 1 : index
    %c0_180 = arith.constant 0 : index
    %c0_181 = arith.constant 0 : index
    %226 = vector.load %arg3[%c1_179, %c0_180, %c0_181] : memref<2x256x128xf32, #tpu.memory_space<vmem>>, vector<1x256x128xf32>
    %227 = vector.shape_cast %226 : vector<1x256x128xf32> to vector<256x128xf32>
    %cst_182 = arith.constant dense<0.000000e+00> : vector<8x128xf32>
    %228 = tpu.matmul %225, %227, %cst_182 {dimension_numbers = #tpu.dot_dimension_numbers<[1], [0], [0], [1], [0, 0, 1, 1], [], []>} : vector<8x256xf32>, vector<256x128xf32>, vector<8x128xf32> -> vector<8x128xf32>
    %c2_183 = arith.constant 2 : index
    %c0_184 = arith.constant 0 : index
    %c0_185 = arith.constant 0 : index
    %229 = vector.load %arg4[%c2_183, %c0_184, %c0_185] : memref<3x1x128xf32, #tpu.memory_space<vmem>>, vector<1x1x128xf32>
    %230 = vector.shape_cast %229 : vector<1x1x128xf32> to vector<1x128xf32>
    %231 = vector.broadcast %230 : vector<1x128xf32> to vector<8x128xf32>
    %232 = arith.addf %228, %231 : vector<8x128xf32>
    %233 = math.tanh %232 : vector<8x128xf32>
    %c0_186 = arith.constant 0 : index
    %c0_187 = arith.constant 0 : index
    %234 = vector.load %arg5[%c0_186, %c0_187] : memref<128x128xf32, #tpu.memory_space<vmem>>, vector<128x128xf32>
    %cst_188 = arith.constant dense<0.000000e+00> : vector<8x128xf32>
    %235 = tpu.matmul %233, %234, %cst_188 {dimension_numbers = #tpu.dot_dimension_numbers<[1], [0], [0], [1], [0, 0, 1, 1], [], []>} : vector<8x128xf32>, vector<128x128xf32>, vector<8x128xf32> -> vector<8x128xf32>
    %c0_189 = arith.constant 0 : index
    %c0_190 = arith.constant 0 : index
    %236 = vector.load %arg6[%c0_189, %c0_190] : memref<1x128xf32, #tpu.memory_space<vmem>>, vector<1x128xf32>
    %237 = vector.broadcast %236 : vector<1x128xf32> to vector<8x128xf32>
    %238 = arith.addf %235, %237 : vector<8x128xf32>
    %c0_191 = arith.constant 0 : index
    %c0_192 = arith.constant 0 : index
    %239 = vector.load %arg7[%c0_191, %c0_192] : memref<8x128xf32, #tpu.memory_space<vmem>>, vector<8x128xf32>
    tpu.vector_store %arg7[%c0_191, %c0_192], %238 {strides = array<i32>} : memref<8x128xf32, #tpu.memory_space<vmem>>, vector<8x128xf32>,
    return
  }
}

</mosaic_0001>

<llo_original>
// kernel: tpu_custom_call.1
$region0: #{tpu_custom_call.1}
  #allocation0 [shape = 'u32[]', space=smem, size = 0x4, offset = 0x4, fixed_abs, tag = 'smem constant byte address 0x4 - core index']
  #allocation1 [shape = 'u32[72,128]{1,0:T(1,128)}', space=vmem, size = 0x9000, scoped, tag = 'internal scratch']
  #allocation2 [shape = 'f32[8,8,128]{2,1,0:T(8,128)}', space=vmem, size = 0x8000, scoped, tag = 'scratch operand']
  %s0 = inlined_call_operand.vmem [shape: f32[64,16], index: 0, kind: input, shape index: {}]
  %s1 = inlined_call_operand.vmem [shape: f32[16,128], index: 1, kind: input, shape index: {}]
  %s2 = inlined_call_operand.hbm [shape: f32[128,128], index: 2, kind: input, shape index: {}]
  %s3 = inlined_call_operand.hbm [shape: f32[2,256,128], index: 3, kind: input, shape index: {}]
  %s4 = inlined_call_operand.vmem [shape: f32[3,1,128], index: 4, kind: input, shape index: {}]
  %s5 = inlined_call_operand.hbm [shape: f32[128,128], index: 5, kind: input, shape index: {}]
  %s6 = inlined_call_operand.vmem [shape: f32[1,128], index: 6, kind: input, shape index: {}]
  %s7 = inlined_call_operand.hbm [shape: f32[8,128], index: 7, kind: output, shape index: {}]
  %s8 = sld [smem:[#allocation0]]
  $region50: #{tpu_custom_call.1} parent=0
    _
  %s10 = ssub.s32 1, %s8
  %s11 = scalar_select 0, %s10, %s8
  $region1: #{tpu_custom_call.1} parent=0
    #allocation3 [shape = 'u8[65536]{0}', space=vmem, size = 0x10000, scoped, tag = 'input window, operand 2, single buffered']
    #allocation4 [shape = 's32[1]{0}', space=sflag, size = 0x4, scoped, tag = 'scoped memory for tpu_custom_call.1']
    #allocation5 [shape = 's32[1]{0}', space=sflag, size = 0x4, scoped, tag = 'scoped memory for tpu_custom_call.1']
    #allocation6 [shape = 'u8[262144]{0}', space=vmem, size = 0x40000, scoped, tag = 'input window, operand 3, single buffered']
    #allocation7 [shape = 's32[1]{0}', space=sflag, size = 0x4, scoped, tag = 'scoped memory for tpu_custom_call.1']
    #allocation8 [shape = 'u8[65536]{0}', space=vmem, size = 0x10000, scoped, tag = 'input window, operand 5, single buffered']
    #allocation9 [shape = 'u8[4096]{0}', space=vmem, size = 0x1000, scoped, tag = 'output window, operand 0, single buffered']
    %12 = vsyncpa [#allocation4], 0
    %13 = vsyncpa [#allocation7], 0
    %14 = vsyncpa [#allocation5], 0
    // Predicated region
    $region2: #{tpu_custom_call.1} parent=1 // pred_check
      _
    $region3: #{tpu_custom_call.1} parent=1 // pred_check_branch
      %16 = sbr.rel (0) target = $region5
    $region4: #{tpu_custom_call.1} parent=1 // pred_region
      _
    $region5: #{tpu_custom_call.1} parent=1 // pred_fallthru
      _
    // Predicated region
    $region6: #{tpu_custom_call.1} parent=1 // pred_check
      _
    $region7: #{tpu_custom_call.1} parent=1 // pred_check_branch
      %18 = sbr.rel (0) target = $region9
    $region8: #{tpu_custom_call.1} parent=1 // pred_region
      _
    $region9: #{tpu_custom_call.1} parent=1 // pred_fallthru
      _
    // Predicated region
    $region10: #{tpu_custom_call.1} parent=1 // pred_check
      _
    $region11: #{tpu_custom_call.1} parent=1 // pred_check_branch
      %20 = sbr.rel (0) target = $region13
    $region12: #{tpu_custom_call.1} parent=1 // pred_region
      %22 = vsyncadd [#allocation4], 0
      %s23 = sshll.u32 %s2, 4
      %s24 = int_to_ptr.hbm [resolvable:$true] %s23
      %s25 = sshll.u32 [#allocation3], 4
      %s26 = int_to_ptr.vmem [resolvable:$true] %s25
      %31 = dma.hbm_to_vmem [thread:$0]  %s24, 2048, %s26, [#allocation4], 128, 128, 8
    $region13: #{tpu_custom_call.1} parent=1 // pred_fallthru
      _
    // Predicated region
    $region14: #{tpu_custom_call.1} parent=1 // pred_check
      _
    $region15: #{tpu_custom_call.1} parent=1 // pred_check_branch
      %33 = sbr.rel (0) target = $region17
    $region16: #{tpu_custom_call.1} parent=1 // pred_region
      %35 = vsyncadd [#allocation7], 0
      %s36 = sshll.u32 %s3, 4
      %s37 = int_to_ptr.hbm [resolvable:$true] %s36
      %s38 = sshll.u32 [#allocation6], 4
      %s39 = int_to_ptr.vmem [resolvable:$true] %s38
      %44 = dma.hbm_to_vmem [thread:$0]  %s37, 8192, %s39, [#allocation7], 128, 128, 8
    $region17: #{tpu_custom_call.1} parent=1 // pred_fallthru
      _
    // Predicated region
    $region18: #{tpu_custom_call.1} parent=1 // pred_check
      _
    $region19: #{tpu_custom_call.1} parent=1 // pred_check_branch
      %46 = sbr.rel (0) target = $region21
    $region20: #{tpu_custom_call.1} parent=1 // pred_region
      _
    $region21: #{tpu_custom_call.1} parent=1 // pred_fallthru
      _
    // Predicated region
    $region22: #{tpu_custom_call.1} parent=1 // pred_check
      _
    $region23: #{tpu_custom_call.1} parent=1 // pred_check_branch
      %48 = sbr.rel (0) target = $region25
    $region24: #{tpu_custom_call.1} parent=1 // pred_region
      %50 = vsyncadd [#allocation7], 0
      %s51 = sshll.u32 %s5, 4
      %s52 = int_to_ptr.hbm [resolvable:$true] %s51
      %s53 = sshll.u32 [#allocation8], 4
      %s54 = int_to_ptr.vmem [resolvable:$true] %s53
      %59 = dma.hbm_to_vmem [thread:$0]  %s52, 2048, %s54, [#allocation7], 128, 128, 8
    $region25: #{tpu_custom_call.1} parent=1 // pred_fallthru
      _
    // Predicated region
    $region26: #{tpu_custom_call.1} parent=1 // pred_check
      _
    $region27: #{tpu_custom_call.1} parent=1 // pred_check_branch
      %61 = sbr.rel (0) target = $region29
    $region28: #{tpu_custom_call.1} parent=1 // pred_region
      _
    $region29: #{tpu_custom_call.1} parent=1 // pred_fallthru
      _
    // Predicated region
    $region30: #{tpu_custom_call.1} parent=1 // pred_check
      _
    $region31: #{tpu_custom_call.1} parent=1 // pred_check_branch
      %63 = sbr.rel (0) target = $region33
    $region32: #{tpu_custom_call.1} parent=1 // pred_region
      %65 = dma.done [#allocation4], 2048
    $region33: #{tpu_custom_call.1} parent=1 // pred_fallthru
      _
    // Predicated region
    $region34: #{tpu_custom_call.1} parent=1 // pred_check
      _
    $region35: #{tpu_custom_call.1} parent=1 // pred_check_branch
      %67 = sbr.rel (0) target = $region37
    $region36: #{tpu_custom_call.1} parent=1 // pred_region
      %69 = dma.done [#allocation7], 8192
    $region37: #{tpu_custom_call.1} parent=1 // pred_fallthru
      _
    // Predicated region
    $region38: #{tpu_custom_call.1} parent=1 // pred_check
      _
    $region39: #{tpu_custom_call.1} parent=1 // pred_check_branch
      %71 = sbr.rel (0) target = $region41
    $region40: #{tpu_custom_call.1} parent=1 // pred_region
      %73 = dma.done [#allocation7], 2048
    $region41: #{tpu_custom_call.1} parent=1 // pred_fallthru
      _
    %v74 = vld [vmem:[%s0] sm:$0xff]
    %v75 = vld [vmem:[%s0 + $0x8] sm:$0xff]
    %v76 = vld [vmem:[%s0 + $0x10] sm:$0xff]
    %v77 = vld [vmem:[%s0 + $0x18] sm:$0xff]
    %v78 = vld [vmem:[%s0 + $0x20] sm:$0xff]
    %v79 = vld [vmem:[%s0 + $0x28] sm:$0xff]
    %v80 = vld [vmem:[%s0 + $0x30] sm:$0xff]
    %v81 = vld [vmem:[%s0 + $0x38] sm:$0xff]
    %v82 = vld [vmem:[%s1] sm:$0xff]
    %v83 = vld [vmem:[%s1 + $0x8] sm:$0xff]
    %v84 = vld [vmem:[%s4] sm:$0x1]
    %v86 = vperm.slane %v84, 0
    %vm88 = vcmask 130048
    %v90 = vsel %vm88, %v74, 0
    %v93 = vsel %vm88, %v75, 0
    %v96 = vsel %vm88, %v76, 0
    %v99 = vsel %vm88, %v77, 0
    %v102 = vsel %vm88, %v78, 0
    %v105 = vsel %vm88, %v79, 0
    %v108 = vsel %vm88, %v80, 0
    %v111 = vsel %vm88, %v81, 0
    %113 = vmatpush.msra.mxu0 0.0
    %114 = vmatpush.msra.mxu0 0.0
    %115 = vmatpush.msra.mxu0 0.0
    %116 = vmatpush.msra.mxu0 0.0
    %117 = vmatpush.msra.mxu0 0.0
    %118 = vmatpush.msra.mxu0 0.0
    %119 = vmatpush.msra.mxu0 0.0
    %120 = vmatpush.msra.mxu0 0.0
    %121 = vmatpush.msra.mxu0 0.0
    %122 = vmatpush.msra.mxu0 0.0
    %123 = vmatpush.msra.mxu0 0.0
    %124 = vmatpush.msra.mxu0 0.0
    %125 = vmatpush.msra.mxu0 0.0
    %126 = vmatpush.msra.mxu0 0.0
    %127 = vmatpush.msra.mxu0 %v83
    %128 = vmatpush.msra.mxu0 %v82
    %129 = vmatmul.f32.gmra.mxu0 %v90
    %v130 = vpop.f32.mrf.mxu0
    %v131 = vadd.f32 %v86, %v130
    %132 = vmatmul.f32.gmra.mxu0 %v93
    %v133 = vpop.f32.mrf.mxu0
    %v134 = vadd.f32 %v86, %v133
    %135 = vmatmul.f32.gmra.mxu0 %v96
    %v136 = vpop.f32.mrf.mxu0
    %v137 = vadd.f32 %v86, %v136
    %138 = vmatmul.f32.gmra.mxu0 %v99
    %v139 = vpop.f32.mrf.mxu0
    %v140 = vadd.f32 %v86, %v139
    %141 = vmatmul.f32.gmra.mxu0 %v102
    %v142 = vpop.f32.mrf.mxu0
    %v143 = vadd.f32 %v86, %v142
    %144 = vmatmul.f32.gmra.mxu0 %v105
    %v145 = vpop.f32.mrf.mxu0
    %v146 = vadd.f32 %v86, %v145
    %147 = vmatmul.f32.gmra.mxu0 %v108
    %v148 = vpop.f32.mrf.mxu0
    %v149 = vadd.f32 %v86, %v148
    %150 = vmatmul.f32.gmra.mxu0 %v111
    %v151 = vpop.f32.mrf.mxu0
    %v152 = vadd.f32 %v86, %v151
    %153 = vdwg.mxu0
    %154 = vst [vmem:[#allocation2] sm:$0xff] %v131
    %s155 = scalar_lea.vmem [#allocation2], 8
    %156 = vst [vmem:[%s155] sm:$0xff] %v134
    %s157 = scalar_lea.vmem [#allocation2], 16
    %158 = vst [vmem:[%s157] sm:$0xff] %v137
    %s159 = scalar_lea.vmem [#allocation2], 24
    %160 = vst [vmem:[%s159] sm:$0xff] %v140
    %s161 = scalar_lea.vmem [#allocation2], 32
    %162 = vst [vmem:[%s161] sm:$0xff] %v143
    %s163 = scalar_lea.vmem [#allocation2], 40
    %164 = vst [vmem:[%s163] sm:$0xff] %v146
    %s165 = scalar_lea.vmem [#allocation2], 48
    %166 = vst [vmem:[%s165] sm:$0xff] %v149
    %s167 = scalar_lea.vmem [#allocation2], 56
    %168 = vst [vmem:[%s167] sm:$0xff] %v152
    %v169 = vld [vmem:[#allocation2] sm:$0xff]
    %v170 = vld [vmem:[#allocation3] sm:$0xff]
    %v171 = vld [vmem:[#allocation3 + $0x8] sm:$0xff]
    %v172 = vld [vmem:[#allocation3 + $0x10] sm:$0xff]
    %v173 = vld [vmem:[#allocation3 + $0x18] sm:$0xff]
    %v174 = vld [vmem:[#allocation3 + $0x20] sm:$0xff]
    %v175 = vld [vmem:[#allocation3 + $0x28] sm:$0xff]
    %v176 = vld [vmem:[#allocation3 + $0x30] sm:$0xff]
    %v177 = vld [vmem:[#allocation3 + $0x38] sm:$0xff]
    %v178 = vld [vmem:[#allocation3 + $0x40] sm:$0xff]
    %v179 = vld [vmem:[#allocation3 + $0x48] sm:$0xff]
    %v180 = vld [vmem:[#allocation3 + $0x50] sm:$0xff]
    %v181 = vld [vmem:[#allocation3 + $0x58] sm:$0xff]
    %v182 = vld [vmem:[#allocation3 + $0x60] sm:$0xff]
    %v183 = vld [vmem:[#allocation3 + $0x68] sm:$0xff]
    %v184 = vld [vmem:[#allocation3 + $0x70] sm:$0xff]
    %v185 = vld [vmem:[#allocation3 + $0x78] sm:$0xff]
    %186 = vmatpush.msra.mxu0 %v185
    %187 = vmatpush.msra.mxu0 %v184
    %188 = vmatpush.msra.mxu0 %v183
    %189 = vmatpush.msra.mxu0 %v182
    %190 = vmatpush.msra.mxu0 %v181
    %191 = vmatpush.msra.mxu0 %v180
    %192 = vmatpush.msra.mxu0 %v179
    %193 = vmatpush.msra.mxu0 %v178
    %194 = vmatpush.msra.mxu0 %v177
    %195 = vmatpush.msra.mxu0 %v176
    %196 = vmatpush.msra.mxu0 %v175
    %197 = vmatpush.msra.mxu0 %v174
    %198 = vmatpush.msra.mxu0 %v173
    %199 = vmatpush.msra.mxu0 %v172
    %200 = vmatpush.msra.mxu0 %v171
    %201 = vmatpush.msra.mxu0 %v170
    %202 = vmatmul.f32.gmra.mxu0 0.0
    %v203 = vpop.f32.mrf.mxu0
    %v204 = vadd.f32 0.0, %v203
    %205 = vdwg.mxu0
    %v206 = vadd.f32 %v169, %v204
    %v207 = vtanh.pop %v206
    %v208 = vld [vmem:[%s155] sm:$0xff]
    %209 = vmatpush.msra.mxu0 %v185
    %210 = vmatpush.msra.mxu0 %v184
    %211 = vmatpush.msra.mxu0 %v183
    %212 = vmatpush.msra.mxu0 %v182
    %213 = vmatpush.msra.mxu0 %v181
    %214 = vmatpush.msra.mxu0 %v180
    %215 = vmatpush.msra.mxu0 %v179
    %216 = vmatpush.msra.mxu0 %v178
    %217 = vmatpush.msra.mxu0 %v177
    %218 = vmatpush.msra.mxu0 %v176
    %219 = vmatpush.msra.mxu0 %v175
    %220 = vmatpush.msra.mxu0 %v174
    %221 = vmatpush.msra.mxu0 %v173
    %222 = vmatpush.msra.mxu0 %v172
    %223 = vmatpush.msra.mxu0 %v171
    %224 = vmatpush.msra.mxu0 %v170
    %225 = vmatmul.f32.gmra.mxu0 %v207
    %v226 = vpop.f32.mrf.mxu0
    %v227 = vadd.f32 0.0, %v226
    %228 = vdwg.mxu0
    %v229 = vadd.f32 %v208, %v227
    %v230 = vtanh.pop %v229
    %v231 = vld [vmem:[#allocation6] sm:$0xff]
    %v232 = vld [vmem:[#allocation6 + $0x8] sm:$0xff]
    %v233 = vld [vmem:[#allocation6 + $0x10] sm:$0xff]
    %v234 = vld [vmem:[#allocation6 + $0x18] sm:$0xff]
    %v235 = vld [vmem:[#allocation6 + $0x20] sm:$0xff]
    %v236 = vld [vmem:[#allocation6 + $0x28] sm:$0xff]
    %v237 = vld [vmem:[#allocation6 + $0x30] sm:$0xff]
    %v238 = vld [vmem:[#allocation6 + $0x38] sm:$0xff]
    %v239 = vld [vmem:[#allocation6 + $0x40] sm:$0xff]
    %v240 = vld [vmem:[#allocation6 + $0x48] sm:$0xff]
    %v241 = vld [vmem:[#allocation6 + $0x50] sm:$0xff]
    %v242 = vld [vmem:[#allocation6 + $0x58] sm:$0xff]
    %v243 = vld [vmem:[#allocation6 + $0x60] sm:$0xff]
    %v244 = vld [vmem:[#allocation6 + $0x68] sm:$0xff]
    %v245 = vld [vmem:[#allocation6 + $0x70] sm:$0xff]
    %v246 = vld [vmem:[#allocation6 + $0x78] sm:$0xff]
    %v247 = vld [vmem:[#allocation6 + $0x80] sm:$0xff]
    %v248 = vld [vmem:[#allocation6 + $0x88] sm:$0xff]
    %v249 = vld [vmem:[#allocation6 + $0x90] sm:$0xff]
    %v250 = vld [vmem:[#allocation6 + $0x98] sm:$0xff]
    %v251 = vld [vmem:[#allocation6 + $0xa0] sm:$0xff]
    %v252 = vld [vmem:[#allocation6 + $0xa8] sm:$0xff]
    %v253 = vld [vmem:[#allocation6 + $0xb0] sm:$0xff]
    %v254 = vld [vmem:[#allocation6 + $0xb8] sm:$0xff]
    %v255 = vld [vmem:[#allocation6 + $0xc0] sm:$0xff]
    %v256 = vld [vmem:[#allocation6 + $0xc8] sm:$0xff]
    %v257 = vld [vmem:[#allocation6 + $0xd0] sm:$0xff]
    %v258 = vld [vmem:[#allocation6 + $0xd8] sm:$0xff]
    %v259 = vld [vmem:[#allocation6 + $0xe0] sm:$0xff]
    %v260 = vld [vmem:[#allocation6 + $0xe8] sm:$0xff]
    %v261 = vld [vmem:[#allocation6 + $0xf0] sm:$0xff]
    %v262 = vld [vmem:[#allocation6 + $0xf8] sm:$0xff]
    %s263 = scalar_lea.vmem %s4, 1
    %v264 = vld [vmem:[%s263] sm:$0x1]
    %v266 = vperm.slane %v264, 0
    %268 = vmatpush.msra.mxu0 %v246
    %269 = vmatpush.msra.mxu0 %v245
    %270 = vmatpush.msra.mxu0 %v244
    %271 = vmatpush.msra.mxu0 %v243
    %272 = vmatpush.msra.mxu0 %v242
    %273 = vmatpush.msra.mxu0 %v241
    %274 = vmatpush.msra.mxu0 %v240
    %275 = vmatpush.msra.mxu0 %v239
    %276 = vmatpush.msra.mxu0 %v238
    %277 = vmatpush.msra.mxu0 %v237
    %278 = vmatpush.msra.mxu0 %v236
    %279 = vmatpush.msra.mxu0 %v235
    %280 = vmatpush.msra.mxu0 %v234
    %281 = vmatpush.msra.mxu0 %v233
    %282 = vmatpush.msra.mxu0 %v232
    %283 = vmatpush.msra.mxu0 %v231
    %284 = vmatmul.f32.gmra.mxu0 %v207
    %v285 = vpop.f32.mrf.mxu0
    %v286 = vadd.f32 %v266, %v285
    %287 = vdwg.mxu0
    %288 = vmatpush.msra.mxu0 %v262
    %289 = vmatpush.msra.mxu0 %v261
    %290 = vmatpush.msra.mxu0 %v260
    %291 = vmatpush.msra.mxu0 %v259
    %292 = vmatpush.msra.mxu0 %v258
    %293 = vmatpush.msra.mxu0 %v257
    %294 = vmatpush.msra.mxu0 %v256
    %295 = vmatpush.msra.mxu0 %v255
    %296 = vmatpush.msra.mxu0 %v254
    %297 = vmatpush.msra.mxu0 %v253
    %298 = vmatpush.msra.mxu0 %v252
    %299 = vmatpush.msra.mxu0 %v251
    %300 = vmatpush.msra.mxu0 %v250
    %301 = vmatpush.msra.mxu0 %v249
    %302 = vmatpush.msra.mxu0 %v248
    %303 = vmatpush.msra.mxu0 %v247
    %304 = vmatmul.f32.gmra.mxu0 0.0
    %v305 = vpop.f32.mrf.mxu0
    %v306 = vadd.f32 %v286, %v305
    %307 = vdwg.mxu0
    %v308 = vtanh.pop %v306
    %v309 = vld [vmem:[%s157] sm:$0xff]
    %310 = vmatpush.msra.mxu0 %v185
    %311 = vmatpush.msra.mxu0 %v184
    %312 = vmatpush.msra.mxu0 %v183
    %313 = vmatpush.msra.mxu0 %v182
    %314 = vmatpush.msra.mxu0 %v181
    %315 = vmatpush.msra.mxu0 %v180
    %316 = vmatpush.msra.mxu0 %v179
    %317 = vmatpush.msra.mxu0 %v178
    %318 = vmatpush.msra.mxu0 %v177
    %319 = vmatpush.msra.mxu0 %v176
    %320 = vmatpush.msra.mxu0 %v175
    %321 = vmatpush.msra.mxu0 %v174
    %322 = vmatpush.msra.mxu0 %v173
    %323 = vmatpush.msra.mxu0 %v172
    %324 = vmatpush.msra.mxu0 %v171
    %325 = vmatpush.msra.mxu0 %v170
    %326 = vmatmul.f32.gmra.mxu0 %v230
    %v327 = vpop.f32.mrf.mxu0
    %v328 = vadd.f32 0.0, %v327
    %329 = vdwg.mxu0
    %v330 = vadd.f32 %v309, %v328
    %v331 = vtanh.pop %v330
    %332 = vmatpush.msra.mxu0 %v246
    %333 = vmatpush.msra.mxu0 %v245
    %334 = vmatpush.msra.mxu0 %v244
    %335 = vmatpush.msra.mxu0 %v243
    %336 = vmatpush.msra.mxu0 %v242
    %337 = vmatpush.msra.mxu0 %v241
    %338 = vmatpush.msra.mxu0 %v240
    %339 = vmatpush.msra.mxu0 %v239
    %340 = vmatpush.msra.mxu0 %v238
    %341 = vmatpush.msra.mxu0 %v237
    %342 = vmatpush.msra.mxu0 %v236
    %343 = vmatpush.msra.mxu0 %v235
    %344 = vmatpush.msra.mxu0 %v234
    %345 = vmatpush.msra.mxu0 %v233
    %346 = vmatpush.msra.mxu0 %v232
    %347 = vmatpush.msra.mxu0 %v231
    %348 = vmatmul.f32.gmra.mxu0 %v230
    %v349 = vpop.f32.mrf.mxu0
    %v350 = vadd.f32 %v266, %v349
    %351 = vdwg.mxu0
    %352 = vmatpush.msra.mxu0 %v262
    %353 = vmatpush.msra.mxu0 %v261
    %354 = vmatpush.msra.mxu0 %v260
    %355 = vmatpush.msra.mxu0 %v259
    %356 = vmatpush.msra.mxu0 %v258
    %357 = vmatpush.msra.mxu0 %v257
    %358 = vmatpush.msra.mxu0 %v256
    %359 = vmatpush.msra.mxu0 %v255
    %360 = vmatpush.msra.mxu0 %v254
    %361 = vmatpush.msra.mxu0 %v253
    %362 = vmatpush.msra.mxu0 %v252
    %363 = vmatpush.msra.mxu0 %v251
    %364 = vmatpush.msra.mxu0 %v250
    %365 = vmatpush.msra.mxu0 %v249
    %366 = vmatpush.msra.mxu0 %v248
    %367 = vmatpush.msra.mxu0 %v247
    %368 = vmatmul.f32.gmra.mxu0 %v308
    %v369 = vpop.f32.mrf.mxu0
    %v370 = vadd.f32 %v350, %v369
    %371 = vdwg.mxu0
    %v372 = vtanh.pop %v370
    %s373 = scalar_lea.vmem [#allocation6], 256
    %v374 = vld [vmem:[%s373] sm:$0xff]
    %v375 = vld [vmem:[%s373 + $0x8] sm:$0xff]
    %v376 = vld [vmem:[%s373 + $0x10] sm:$0xff]
    %v377 = vld [vmem:[%s373 + $0x18] sm:$0xff]
    %v378 = vld [vmem:[%s373 + $0x20] sm:$0xff]
    %v379 = vld [vmem:[%s373 + $0x28] sm:$0xff]
    %v380 = vld [vmem:[%s373 + $0x30] sm:$0xff]
    %v381 = vld [vmem:[%s373 + $0x38] sm:$0xff]
    %v382 = vld [vmem:[%s373 + $0x40] sm:$0xff]
    %v383 = vld [vmem:[%s373 + $0x48] sm:$0xff]
    %v384 = vld [vmem:[%s373 + $0x50] sm:$0xff]
    %v385 = vld [vmem:[%s373 + $0x58] sm:$0xff]
    %v386 = vld [vmem:[%s373 + $0x60] sm:$0xff]
    %v387 = vld [vmem:[%s373 + $0x68] sm:$0xff]
    %v388 = vld [vmem:[%s373 + $0x70] sm:$0xff]
    %v389 = vld [vmem:[%s373 + $0x78] sm:$0xff]
    %v390 = vld [vmem:[%s373 + $0x80] sm:$0xff]
    %v391 = vld [vmem:[%s373 + $0x88] sm:$0xff]
    %v392 = vld [vmem:[%s373 + $0x90] sm:$0xff]
    %v393 = vld [vmem:[%s373 + $0x98] sm:$0xff]
    %v394 = vld [vmem:[%s373 + $0xa0] sm:$0xff]
    %v395 = vld [vmem:[%s373 + $0xa8] sm:$0xff]
    %v396 = vld [vmem:[%s373 + $0xb0] sm:$0xff]
    %v397 = vld [vmem:[%s373 + $0xb8] sm:$0xff]
    %v398 = vld [vmem:[%s373 + $0xc0] sm:$0xff]
    %v399 = vld [vmem:[%s373 + $0xc8] sm:$0xff]
    %v400 = vld [vmem:[%s373 + $0xd0] sm:$0xff]
    %v401 = vld [vmem:[%s373 + $0xd8] sm:$0xff]
    %v402 = vld [vmem:[%s373 + $0xe0] sm:$0xff]
    %v403 = vld [vmem:[%s373 + $0xe8] sm:$0xff]
    %v404 = vld [vmem:[%s373 + $0xf0] sm:$0xff]
    %v405 = vld [vmem:[%s373 + $0xf8] sm:$0xff]
    %s406 = scalar_lea.vmem %s4, 2
    %v407 = vld [vmem:[%s406] sm:$0x1]
    %v409 = vperm.slane %v407, 0
    %411 = vmatpush.msra.mxu0 %v389
    %412 = vmatpush.msra.mxu0 %v388
    %413 = vmatpush.msra.mxu0 %v387
    %414 = vmatpush.msra.mxu0 %v386
    %415 = vmatpush.msra.mxu0 %v385
    %416 = vmatpush.msra.mxu0 %v384
    %417 = vmatpush.msra.mxu0 %v383
    %418 = vmatpush.msra.mxu0 %v382
    %419 = vmatpush.msra.mxu0 %v381
    %420 = vmatpush.msra.mxu0 %v380
    %421 = vmatpush.msra.mxu0 %v379
    %422 = vmatpush.msra.mxu0 %v378
    %423 = vmatpush.msra.mxu0 %v377
    %424 = vmatpush.msra.mxu0 %v376
    %425 = vmatpush.msra.mxu0 %v375
    %426 = vmatpush.msra.mxu0 %v374
    %427 = vmatmul.f32.gmra.mxu0 %v308
    %v428 = vpop.f32.mrf.mxu0
    %v429 = vadd.f32 %v409, %v428
    %430 = vdwg.mxu0
    %431 = vmatpush.msra.mxu0 %v405
    %432 = vmatpush.msra.mxu0 %v404
    %433 = vmatpush.msra.mxu0 %v403
    %434 = vmatpush.msra.mxu0 %v402
    %435 = vmatpush.msra.mxu0 %v401
    %436 = vmatpush.msra.mxu0 %v400
    %437 = vmatpush.msra.mxu0 %v399
    %438 = vmatpush.msra.mxu0 %v398
    %439 = vmatpush.msra.mxu0 %v397
    %440 = vmatpush.msra.mxu0 %v396
    %441 = vmatpush.msra.mxu0 %v395
    %442 = vmatpush.msra.mxu0 %v394
    %443 = vmatpush.msra.mxu0 %v393
    %444 = vmatpush.msra.mxu0 %v392
    %445 = vmatpush.msra.mxu0 %v391
    %446 = vmatpush.msra.mxu0 %v390
    %447 = vmatmul.f32.gmra.mxu0 0.0
    %v448 = vpop.f32.mrf.mxu0
    %v449 = vadd.f32 %v429, %v448
    %450 = vdwg.mxu0
    %v451 = vtanh.pop %v449
    %v452 = vld [vmem:[%s159] sm:$0xff]
    %453 = vmatpush.msra.mxu0 %v185
    %454 = vmatpush.msra.mxu0 %v184
    %455 = vmatpush.msra.mxu0 %v183
    %456 = vmatpush.msra.mxu0 %v182
    %457 = vmatpush.msra.mxu0 %v181
    %458 = vmatpush.msra.mxu0 %v180
    %459 = vmatpush.msra.mxu0 %v179
    %460 = vmatpush.msra.mxu0 %v178
    %461 = vmatpush.msra.mxu0 %v177
    %462 = vmatpush.msra.mxu0 %v176
    %463 = vmatpush.msra.mxu0 %v175
    %464 = vmatpush.msra.mxu0 %v174
    %465 = vmatpush.msra.mxu0 %v173
    %466 = vmatpush.msra.mxu0 %v172
    %467 = vmatpush.msra.mxu0 %v171
    %468 = vmatpush.msra.mxu0 %v170
    %469 = vmatmul.f32.gmra.mxu0 %v331
    %v470 = vpop.f32.mrf.mxu0
    %v471 = vadd.f32 0.0, %v470
    %472 = vdwg.mxu0
    %v473 = vadd.f32 %v452, %v471
    %v474 = vtanh.pop %v473
    %475 = vmatpush.msra.mxu0 %v246
    %476 = vmatpush.msra.mxu0 %v245
    %477 = vmatpush.msra.mxu0 %v244
    %478 = vmatpush.msra.mxu0 %v243
    %479 = vmatpush.msra.mxu0 %v242
    %480 = vmatpush.msra.mxu0 %v241
    %481 = vmatpush.msra.mxu0 %v240
    %482 = vmatpush.msra.mxu0 %v239
    %483 = vmatpush.msra.mxu0 %v238
    %484 = vmatpush.msra.mxu0 %v237
    %485 = vmatpush.msra.mxu0 %v236
    %486 = vmatpush.msra.mxu0 %v235
    %487 = vmatpush.msra.mxu0 %v234
    %488 = vmatpush.msra.mxu0 %v233
    %489 = vmatpush.msra.mxu0 %v232
    %490 = vmatpush.msra.mxu0 %v231
    %491 = vmatmul.f32.gmra.mxu0 %v331
    %v492 = vpop.f32.mrf.mxu0
    %v493 = vadd.f32 %v266, %v492
    %494 = vdwg.mxu0
    %495 = vmatpush.msra.mxu0 %v262
    %496 = vmatpush.msra.mxu0 %v261
    %497 = vmatpush.msra.mxu0 %v260
    %498 = vmatpush.msra.mxu0 %v259
    %499 = vmatpush.msra.mxu0 %v258
    %500 = vmatpush.msra.mxu0 %v257
    %501 = vmatpush.msra.mxu0 %v256
    %502 = vmatpush.msra.mxu0 %v255
    %503 = vmatpush.msra.mxu0 %v254
    %504 = vmatpush.msra.mxu0 %v253
    %505 = vmatpush.msra.mxu0 %v252
    %506 = vmatpush.msra.mxu0 %v251
    %507 = vmatpush.msra.mxu0 %v250
    %508 = vmatpush.msra.mxu0 %v249
    %509 = vmatpush.msra.mxu0 %v248
    %510 = vmatpush.msra.mxu0 %v247
    %511 = vmatmul.f32.gmra.mxu0 %v372
    %v512 = vpop.f32.mrf.mxu0
    %v513 = vadd.f32 %v493, %v512
    %514 = vdwg.mxu0
    %v515 = vtanh.pop %v513
    %516 = vmatpush.msra.mxu0 %v389
    %517 = vmatpush.msra.mxu0 %v388
    %518 = vmatpush.msra.mxu0 %v387
    %519 = vmatpush.msra.mxu0 %v386
    %520 = vmatpush.msra.mxu0 %v385
    %521 = vmatpush.msra.mxu0 %v384
    %522 = vmatpush.msra.mxu0 %v383
    %523 = vmatpush.msra.mxu0 %v382
    %524 = vmatpush.msra.mxu0 %v381
    %525 = vmatpush.msra.mxu0 %v380
    %526 = vmatpush.msra.mxu0 %v379
    %527 = vmatpush.msra.mxu0 %v378
    %528 = vmatpush.msra.mxu0 %v377
    %529 = vmatpush.msra.mxu0 %v376
    %530 = vmatpush.msra.mxu0 %v375
    %531 = vmatpush.msra.mxu0 %v374
    %532 = vmatmul.f32.gmra.mxu0 %v372
    %v533 = vpop.f32.mrf.mxu0
    %v534 = vadd.f32 %v409, %v533
    %535 = vdwg.mxu0
    %536 = vmatpush.msra.mxu0 %v405
    %537 = vmatpush.msra.mxu0 %v404
    %538 = vmatpush.msra.mxu0 %v403
    %539 = vmatpush.msra.mxu0 %v402
    %540 = vmatpush.msra.mxu0 %v401
    %541 = vmatpush.msra.mxu0 %v400
    %542 = vmatpush.msra.mxu0 %v399
    %543 = vmatpush.msra.mxu0 %v398
    %544 = vmatpush.msra.mxu0 %v397
    %545 = vmatpush.msra.mxu0 %v396
    %546 = vmatpush.msra.mxu0 %v395
    %547 = vmatpush.msra.mxu0 %v394
    %548 = vmatpush.msra.mxu0 %v393
    %549 = vmatpush.msra.mxu0 %v392
    %550 = vmatpush.msra.mxu0 %v391
    %551 = vmatpush.msra.mxu0 %v390
    %552 = vmatmul.f32.gmra.mxu0 %v451
    %v553 = vpop.f32.mrf.mxu0
    %v554 = vadd.f32 %v534, %v553
    %555 = vdwg.mxu0
    %v556 = vtanh.pop %v554
    %v557 = vld [vmem:[%s161] sm:$0xff]
    %558 = vmatpush.msra.mxu0 %v185
    %559 = vmatpush.msra.mxu0 %v184
    %560 = vmatpush.msra.mxu0 %v183
    %561 = vmatpush.msra.mxu0 %v182
    %562 = vmatpush.msra.mxu0 %v181
    %563 = vmatpush.msra.mxu0 %v180
    %564 = vmatpush.msra.mxu0 %v179
    %565 = vmatpush.msra.mxu0 %v178
    %566 = vmatpush.msra.mxu0 %v177
    %567 = vmatpush.msra.mxu0 %v176
    %568 = vmatpush.msra.mxu0 %v175
    %569 = vmatpush.msra.mxu0 %v174
    %570 = vmatpush.msra.mxu0 %v173
    %571 = vmatpush.msra.mxu0 %v172
    %572 = vmatpush.msra.mxu0 %v171
    %573 = vmatpush.msra.mxu0 %v170
    %574 = vmatmul.f32.gmra.mxu0 %v474
    %v575 = vpop.f32.mrf.mxu0
    %v576 = vadd.f32 0.0, %v575
    %577 = vdwg.mxu0
    %v578 = vadd.f32 %v557, %v576
    %v579 = vtanh.pop %v578
    %580 = vmatpush.msra.mxu0 %v246
    %581 = vmatpush.msra.mxu0 %v245
    %582 = vmatpush.msra.mxu0 %v244
    %583 = vmatpush.msra.mxu0 %v243
    %584 = vmatpush.msra.mxu0 %v242
    %585 = vmatpush.msra.mxu0 %v241
    %586 = vmatpush.msra.mxu0 %v240
    %587 = vmatpush.msra.mxu0 %v239
    %588 = vmatpush.msra.mxu0 %v238
    %589 = vmatpush.msra.mxu0 %v237
    %590 = vmatpush.msra.mxu0 %v236
    %591 = vmatpush.msra.mxu0 %v235
    %592 = vmatpush.msra.mxu0 %v234
    %593 = vmatpush.msra.mxu0 %v233
    %594 = vmatpush.msra.mxu0 %v232
    %595 = vmatpush.msra.mxu0 %v231
    %596 = vmatmul.f32.gmra.mxu0 %v474
    %v597 = vpop.f32.mrf.mxu0
    %v598 = vadd.f32 %v266, %v597
    %599 = vdwg.mxu0
    %600 = vmatpush.msra.mxu0 %v262
    %601 = vmatpush.msra.mxu0 %v261
    %602 = vmatpush.msra.mxu0 %v260
    %603 = vmatpush.msra.mxu0 %v259
    %604 = vmatpush.msra.mxu0 %v258
    %605 = vmatpush.msra.mxu0 %v257
    %606 = vmatpush.msra.mxu0 %v256
    %607 = vmatpush.msra.mxu0 %v255
    %608 = vmatpush.msra.mxu0 %v254
    %609 = vmatpush.msra.mxu0 %v253
    %610 = vmatpush.msra.mxu0 %v252
    %611 = vmatpush.msra.mxu0 %v251
    %612 = vmatpush.msra.mxu0 %v250
    %613 = vmatpush.msra.mxu0 %v249
    %614 = vmatpush.msra.mxu0 %v248
    %615 = vmatpush.msra.mxu0 %v247
    %616 = vmatmul.f32.gmra.mxu0 %v515
    %v617 = vpop.f32.mrf.mxu0
    %v618 = vadd.f32 %v598, %v617
    %619 = vdwg.mxu0
    %v620 = vtanh.pop %v618
    %621 = vmatpush.msra.mxu0 %v389
    %622 = vmatpush.msra.mxu0 %v388
    %623 = vmatpush.msra.mxu0 %v387
    %624 = vmatpush.msra.mxu0 %v386
    %625 = vmatpush.msra.mxu0 %v385
    %626 = vmatpush.msra.mxu0 %v384
    %627 = vmatpush.msra.mxu0 %v383
    %628 = vmatpush.msra.mxu0 %v382
    %629 = vmatpush.msra.mxu0 %v381
    %630 = vmatpush.msra.mxu0 %v380
    %631 = vmatpush.msra.mxu0 %v379
    %632 = vmatpush.msra.mxu0 %v378
    %633 = vmatpush.msra.mxu0 %v377
    %634 = vmatpush.msra.mxu0 %v376
    %635 = vmatpush.msra.mxu0 %v375
    %636 = vmatpush.msra.mxu0 %v374
    %637 = vmatmul.f32.gmra.mxu0 %v515
    %v638 = vpop.f32.mrf.mxu0
    %v639 = vadd.f32 %v409, %v638
    %640 = vdwg.mxu0
    %641 = vmatpush.msra.mxu0 %v405
    %642 = vmatpush.msra.mxu0 %v404
    %643 = vmatpush.msra.mxu0 %v403
    %644 = vmatpush.msra.mxu0 %v402
    %645 = vmatpush.msra.mxu0 %v401
    %646 = vmatpush.msra.mxu0 %v400
    %647 = vmatpush.msra.mxu0 %v399
    %648 = vmatpush.msra.mxu0 %v398
    %649 = vmatpush.msra.mxu0 %v397
    %650 = vmatpush.msra.mxu0 %v396
    %651 = vmatpush.msra.mxu0 %v395
    %652 = vmatpush.msra.mxu0 %v394
    %653 = vmatpush.msra.mxu0 %v393
    %654 = vmatpush.msra.mxu0 %v392
    %655 = vmatpush.msra.mxu0 %v391
    %656 = vmatpush.msra.mxu0 %v390
    %657 = vmatmul.f32.gmra.mxu0 %v556
    %v658 = vpop.f32.mrf.mxu0
    %v659 = vadd.f32 %v639, %v658
    %660 = vdwg.mxu0
    %v661 = vtanh.pop %v659
    %v662 = vld [vmem:[%s163] sm:$0xff]
    %663 = vmatpush.msra.mxu0 %v185
    %664 = vmatpush.msra.mxu0 %v184
    %665 = vmatpush.msra.mxu0 %v183
    %666 = vmatpush.msra.mxu0 %v182
    %667 = vmatpush.msra.mxu0 %v181
    %668 = vmatpush.msra.mxu0 %v180
    %669 = vmatpush.msra.mxu0 %v179
    %670 = vmatpush.msra.mxu0 %v178
    %671 = vmatpush.msra.mxu0 %v177
    %672 = vmatpush.msra.mxu0 %v176
    %673 = vmatpush.msra.mxu0 %v175
    %674 = vmatpush.msra.mxu0 %v174
    %675 = vmatpush.msra.mxu0 %v173
    %676 = vmatpush.msra.mxu0 %v172
    %677 = vmatpush.msra.mxu0 %v171
    %678 = vmatpush.msra.mxu0 %v170
    %679 = vmatmul.f32.gmra.mxu0 %v579
    %v680 = vpop.f32.mrf.mxu0
    %v681 = vadd.f32 0.0, %v680
    %682 = vdwg.mxu0
    %v683 = vadd.f32 %v662, %v681
    %v684 = vtanh.pop %v683
    %685 = vmatpush.msra.mxu0 %v246
    %686 = vmatpush.msra.mxu0 %v245
    %687 = vmatpush.msra.mxu0 %v244
    %688 = vmatpush.msra.mxu0 %v243
    %689 = vmatpush.msra.mxu0 %v242
    %690 = vmatpush.msra.mxu0 %v241
    %691 = vmatpush.msra.mxu0 %v240
    %692 = vmatpush.msra.mxu0 %v239
    %693 = vmatpush.msra.mxu0 %v238
    %694 = vmatpush.msra.mxu0 %v237
    %695 = vmatpush.msra.mxu0 %v236
    %696 = vmatpush.msra.mxu0 %v235
    %697 = vmatpush.msra.mxu0 %v234
    %698 = vmatpush.msra.mxu0 %v233
    %699 = vmatpush.msra.mxu0 %v232
    %700 = vmatpush.msra.mxu0 %v231
    %701 = vmatmul.f32.gmra.mxu0 %v579
    %v702 = vpop.f32.mrf.mxu0
    %v703 = vadd.f32 %v266, %v702
    %704 = vdwg.mxu0
    %705 = vmatpush.msra.mxu0 %v262
    %706 = vmatpush.msra.mxu0 %v261
    %707 = vmatpush.msra.mxu0 %v260
    %708 = vmatpush.msra.mxu0 %v259
    %709 = vmatpush.msra.mxu0 %v258
    %710 = vmatpush.msra.mxu0 %v257
    %711 = vmatpush.msra.mxu0 %v256
    %712 = vmatpush.msra.mxu0 %v255
    %713 = vmatpush.msra.mxu0 %v254
    %714 = vmatpush.msra.mxu0 %v253
    %715 = vmatpush.msra.mxu0 %v252
    %716 = vmatpush.msra.mxu0 %v251
    %717 = vmatpush.msra.mxu0 %v250
    %718 = vmatpush.msra.mxu0 %v249
    %719 = vmatpush.msra.mxu0 %v248
    %720 = vmatpush.msra.mxu0 %v247
    %721 = vmatmul.f32.gmra.mxu0 %v620
    %v722 = vpop.f32.mrf.mxu0
    %v723 = vadd.f32 %v703, %v722
    %724 = vdwg.mxu0
    %v725 = vtanh.pop %v723
    %726 = vmatpush.msra.mxu0 %v389
    %727 = vmatpush.msra.mxu0 %v388
    %728 = vmatpush.msra.mxu0 %v387
    %729 = vmatpush.msra.mxu0 %v386
    %730 = vmatpush.msra.mxu0 %v385
    %731 = vmatpush.msra.mxu0 %v384
    %732 = vmatpush.msra.mxu0 %v383
    %733 = vmatpush.msra.mxu0 %v382
    %734 = vmatpush.msra.mxu0 %v381
    %735 = vmatpush.msra.mxu0 %v380
    %736 = vmatpush.msra.mxu0 %v379
    %737 = vmatpush.msra.mxu0 %v378
    %738 = vmatpush.msra.mxu0 %v377
    %739 = vmatpush.msra.mxu0 %v376
    %740 = vmatpush.msra.mxu0 %v375
    %741 = vmatpush.msra.mxu0 %v374
    %742 = vmatmul.f32.gmra.mxu0 %v620
    %v743 = vpop.f32.mrf.mxu0
    %v744 = vadd.f32 %v409, %v743
    %745 = vdwg.mxu0
    %746 = vmatpush.msra.mxu0 %v405
    %747 = vmatpush.msra.mxu0 %v404
    %748 = vmatpush.msra.mxu0 %v403
    %749 = vmatpush.msra.mxu0 %v402
    %750 = vmatpush.msra.mxu0 %v401
    %751 = vmatpush.msra.mxu0 %v400
    %752 = vmatpush.msra.mxu0 %v399
    %753 = vmatpush.msra.mxu0 %v398
    %754 = vmatpush.msra.mxu0 %v397
    %755 = vmatpush.msra.mxu0 %v396
    %756 = vmatpush.msra.mxu0 %v395
    %757 = vmatpush.msra.mxu0 %v394
    %758 = vmatpush.msra.mxu0 %v393
    %759 = vmatpush.msra.mxu0 %v392
    %760 = vmatpush.msra.mxu0 %v391
    %761 = vmatpush.msra.mxu0 %v390
    %762 = vmatmul.f32.gmra.mxu0 %v661
    %v763 = vpop.f32.mrf.mxu0
    %v764 = vadd.f32 %v744, %v763
    %765 = vdwg.mxu0
    %v766 = vtanh.pop %v764
    %v767 = vld [vmem:[%s165] sm:$0xff]
    %768 = vmatpush.msra.mxu0 %v185
    %769 = vmatpush.msra.mxu0 %v184
    %770 = vmatpush.msra.mxu0 %v183
    %771 = vmatpush.msra.mxu0 %v182
    %772 = vmatpush.msra.mxu0 %v181
    %773 = vmatpush.msra.mxu0 %v180
    %774 = vmatpush.msra.mxu0 %v179
    %775 = vmatpush.msra.mxu0 %v178
    %776 = vmatpush.msra.mxu0 %v177
    %777 = vmatpush.msra.mxu0 %v176
    %778 = vmatpush.msra.mxu0 %v175
    %779 = vmatpush.msra.mxu0 %v174
    %780 = vmatpush.msra.mxu0 %v173
    %781 = vmatpush.msra.mxu0 %v172
    %782 = vmatpush.msra.mxu0 %v171
    %783 = vmatpush.msra.mxu0 %v170
    %784 = vmatmul.f32.gmra.mxu0 %v684
    %v785 = vpop.f32.mrf.mxu0
    %v786 = vadd.f32 0.0, %v785
    %787 = vdwg.mxu0
    %v788 = vadd.f32 %v767, %v786
    %v789 = vtanh.pop %v788
    %790 = vmatpush.msra.mxu0 %v246
    %791 = vmatpush.msra.mxu0 %v245
    %792 = vmatpush.msra.mxu0 %v244
    %793 = vmatpush.msra.mxu0 %v243
    %794 = vmatpush.msra.mxu0 %v242
    %795 = vmatpush.msra.mxu0 %v241
    %796 = vmatpush.msra.mxu0 %v240
    %797 = vmatpush.msra.mxu0 %v239
    %798 = vmatpush.msra.mxu0 %v238
    %799 = vmatpush.msra.mxu0 %v237
    %800 = vmatpush.msra.mxu0 %v236
    %801 = vmatpush.msra.mxu0 %v235
    %802 = vmatpush.msra.mxu0 %v234
    %803 = vmatpush.msra.mxu0 %v233
    %804 = vmatpush.msra.mxu0 %v232
    %805 = vmatpush.msra.mxu0 %v231
    %806 = vmatmul.f32.gmra.mxu0 %v684
    %v807 = vpop.f32.mrf.mxu0
    %v808 = vadd.f32 %v266, %v807
    %809 = vdwg.mxu0
    %810 = vmatpush.msra.mxu0 %v262
    %811 = vmatpush.msra.mxu0 %v261
    %812 = vmatpush.msra.mxu0 %v260
    %813 = vmatpush.msra.mxu0 %v259
    %814 = vmatpush.msra.mxu0 %v258
    %815 = vmatpush.msra.mxu0 %v257
    %816 = vmatpush.msra.mxu0 %v256
    %817 = vmatpush.msra.mxu0 %v255
    %818 = vmatpush.msra.mxu0 %v254
    %819 = vmatpush.msra.mxu0 %v253
    %820 = vmatpush.msra.mxu0 %v252
    %821 = vmatpush.msra.mxu0 %v251
    %822 = vmatpush.msra.mxu0 %v250
    %823 = vmatpush.msra.mxu0 %v249
    %824 = vmatpush.msra.mxu0 %v248
    %825 = vmatpush.msra.mxu0 %v247
    %826 = vmatmul.f32.gmra.mxu0 %v725
    %v827 = vpop.f32.mrf.mxu0
    %v828 = vadd.f32 %v808, %v827
    %829 = vdwg.mxu0
    %v830 = vtanh.pop %v828
    %831 = vmatpush.msra.mxu0 %v389
    %832 = vmatpush.msra.mxu0 %v388
    %833 = vmatpush.msra.mxu0 %v387
    %834 = vmatpush.msra.mxu0 %v386
    %835 = vmatpush.msra.mxu0 %v385
    %836 = vmatpush.msra.mxu0 %v384
    %837 = vmatpush.msra.mxu0 %v383
    %838 = vmatpush.msra.mxu0 %v382
    %839 = vmatpush.msra.mxu0 %v381
    %840 = vmatpush.msra.mxu0 %v380
    %841 = vmatpush.msra.mxu0 %v379
    %842 = vmatpush.msra.mxu0 %v378
    %843 = vmatpush.msra.mxu0 %v377
    %844 = vmatpush.msra.mxu0 %v376
    %845 = vmatpush.msra.mxu0 %v375
    %846 = vmatpush.msra.mxu0 %v374
    %847 = vmatmul.f32.gmra.mxu0 %v725
    %v848 = vpop.f32.mrf.mxu0
    %v849 = vadd.f32 %v409, %v848
    %850 = vdwg.mxu0
    %851 = vmatpush.msra.mxu0 %v405
    %852 = vmatpush.msra.mxu0 %v404
    %853 = vmatpush.msra.mxu0 %v403
    %854 = vmatpush.msra.mxu0 %v402
    %855 = vmatpush.msra.mxu0 %v401
    %856 = vmatpush.msra.mxu0 %v400
    %857 = vmatpush.msra.mxu0 %v399
    %858 = vmatpush.msra.mxu0 %v398
    %859 = vmatpush.msra.mxu0 %v397
    %860 = vmatpush.msra.mxu0 %v396
    %861 = vmatpush.msra.mxu0 %v395
    %862 = vmatpush.msra.mxu0 %v394
    %863 = vmatpush.msra.mxu0 %v393
    %864 = vmatpush.msra.mxu0 %v392
    %865 = vmatpush.msra.mxu0 %v391
    %866 = vmatpush.msra.mxu0 %v390
    %867 = vmatmul.f32.gmra.mxu0 %v766
    %v868 = vpop.f32.mrf.mxu0
    %v869 = vadd.f32 %v849, %v868
    %870 = vdwg.mxu0
    %v871 = vtanh.pop %v869
    %v872 = vld [vmem:[%s167] sm:$0xff]
    %873 = vmatpush.msra.mxu0 %v185
    %874 = vmatpush.msra.mxu0 %v184
    %875 = vmatpush.msra.mxu0 %v183
    %876 = vmatpush.msra.mxu0 %v182
    %877 = vmatpush.msra.mxu0 %v181
    %878 = vmatpush.msra.mxu0 %v180
    %879 = vmatpush.msra.mxu0 %v179
    %880 = vmatpush.msra.mxu0 %v178
    %881 = vmatpush.msra.mxu0 %v177
    %882 = vmatpush.msra.mxu0 %v176
    %883 = vmatpush.msra.mxu0 %v175
    %884 = vmatpush.msra.mxu0 %v174
    %885 = vmatpush.msra.mxu0 %v173
    %886 = vmatpush.msra.mxu0 %v172
    %887 = vmatpush.msra.mxu0 %v171
    %888 = vmatpush.msra.mxu0 %v170
    %889 = vmatmul.f32.gmra.mxu0 %v789
    %v890 = vpop.f32.mrf.mxu0
    %v891 = vadd.f32 0.0, %v890
    %892 = vdwg.mxu0
    %v893 = vadd.f32 %v872, %v891
    %v894 = vtanh.pop %v893
    %895 = vmatpush.msra.mxu0 %v246
    %896 = vmatpush.msra.mxu0 %v245
    %897 = vmatpush.msra.mxu0 %v244
    %898 = vmatpush.msra.mxu0 %v243
    %899 = vmatpush.msra.mxu0 %v242
    %900 = vmatpush.msra.mxu0 %v241
    %901 = vmatpush.msra.mxu0 %v240
    %902 = vmatpush.msra.mxu0 %v239
    %903 = vmatpush.msra.mxu0 %v238
    %904 = vmatpush.msra.mxu0 %v237
    %905 = vmatpush.msra.mxu0 %v236
    %906 = vmatpush.msra.mxu0 %v235
    %907 = vmatpush.msra.mxu0 %v234
    %908 = vmatpush.msra.mxu0 %v233
    %909 = vmatpush.msra.mxu0 %v232
    %910 = vmatpush.msra.mxu0 %v231
    %911 = vmatmul.f32.gmra.mxu0 %v789
    %v912 = vpop.f32.mrf.mxu0
    %v913 = vadd.f32 %v266, %v912
    %914 = vdwg.mxu0
    %915 = vmatpush.msra.mxu0 %v262
    %916 = vmatpush.msra.mxu0 %v261
    %917 = vmatpush.msra.mxu0 %v260
    %918 = vmatpush.msra.mxu0 %v259
    %919 = vmatpush.msra.mxu0 %v258
    %920 = vmatpush.msra.mxu0 %v257
    %921 = vmatpush.msra.mxu0 %v256
    %922 = vmatpush.msra.mxu0 %v255
    %923 = vmatpush.msra.mxu0 %v254
    %924 = vmatpush.msra.mxu0 %v253
    %925 = vmatpush.msra.mxu0 %v252
    %926 = vmatpush.msra.mxu0 %v251
    %927 = vmatpush.msra.mxu0 %v250
    %928 = vmatpush.msra.mxu0 %v249
    %929 = vmatpush.msra.mxu0 %v248
    %930 = vmatpush.msra.mxu0 %v247
    %931 = vmatmul.f32.gmra.mxu0 %v830
    %v932 = vpop.f32.mrf.mxu0
    %v933 = vadd.f32 %v913, %v932
    %934 = vdwg.mxu0
    %v935 = vtanh.pop %v933
    %936 = vmatpush.msra.mxu0 %v389
    %937 = vmatpush.msra.mxu0 %v388
    %938 = vmatpush.msra.mxu0 %v387
    %939 = vmatpush.msra.mxu0 %v386
    %940 = vmatpush.msra.mxu0 %v385
    %941 = vmatpush.msra.mxu0 %v384
    %942 = vmatpush.msra.mxu0 %v383
    %943 = vmatpush.msra.mxu0 %v382
    %944 = vmatpush.msra.mxu0 %v381
    %945 = vmatpush.msra.mxu0 %v380
    %946 = vmatpush.msra.mxu0 %v379
    %947 = vmatpush.msra.mxu0 %v378
    %948 = vmatpush.msra.mxu0 %v377
    %949 = vmatpush.msra.mxu0 %v376
    %950 = vmatpush.msra.mxu0 %v375
    %951 = vmatpush.msra.mxu0 %v374
    %952 = vmatmul.f32.gmra.mxu0 %v830
    %v953 = vpop.f32.mrf.mxu0
    %v954 = vadd.f32 %v409, %v953
    %955 = vdwg.mxu0
    %956 = vmatpush.msra.mxu0 %v405
    %957 = vmatpush.msra.mxu0 %v404
    %958 = vmatpush.msra.mxu0 %v403
    %959 = vmatpush.msra.mxu0 %v402
    %960 = vmatpush.msra.mxu0 %v401
    %961 = vmatpush.msra.mxu0 %v400
    %962 = vmatpush.msra.mxu0 %v399
    %963 = vmatpush.msra.mxu0 %v398
    %964 = vmatpush.msra.mxu0 %v397
    %965 = vmatpush.msra.mxu0 %v396
    %966 = vmatpush.msra.mxu0 %v395
    %967 = vmatpush.msra.mxu0 %v394
    %968 = vmatpush.msra.mxu0 %v393
    %969 = vmatpush.msra.mxu0 %v392
    %970 = vmatpush.msra.mxu0 %v391
    %971 = vmatpush.msra.mxu0 %v390
    %972 = vmatmul.f32.gmra.mxu0 %v871
    %v973 = vpop.f32.mrf.mxu0
    %v974 = vadd.f32 %v954, %v973
    %975 = vdwg.mxu0
    %v976 = vtanh.pop %v974
    %977 = vmatpush.msra.mxu0 %v246
    %978 = vmatpush.msra.mxu0 %v245
    %979 = vmatpush.msra.mxu0 %v244
    %980 = vmatpush.msra.mxu0 %v243
    %981 = vmatpush.msra.mxu0 %v242
    %982 = vmatpush.msra.mxu0 %v241
    %983 = vmatpush.msra.mxu0 %v240
    %984 = vmatpush.msra.mxu0 %v239
    %985 = vmatpush.msra.mxu0 %v238
    %986 = vmatpush.msra.mxu0 %v237
    %987 = vmatpush.msra.mxu0 %v236
    %988 = vmatpush.msra.mxu0 %v235
    %989 = vmatpush.msra.mxu0 %v234
    %990 = vmatpush.msra.mxu0 %v233
    %991 = vmatpush.msra.mxu0 %v232
    %992 = vmatpush.msra.mxu0 %v231
    %993 = vmatmul.f32.gmra.mxu0 %v894
    %v994 = vpop.f32.mrf.mxu0
    %v995 = vadd.f32 %v266, %v994
    %996 = vdwg.mxu0
    %997 = vmatpush.msra.mxu0 %v262
    %998 = vmatpush.msra.mxu0 %v261
    %999 = vmatpush.msra.mxu0 %v260
    %1000 = vmatpush.msra.mxu0 %v259
    %1001 = vmatpush.msra.mxu0 %v258
    %1002 = vmatpush.msra.mxu0 %v257
    %1003 = vmatpush.msra.mxu0 %v256
    %1004 = vmatpush.msra.mxu0 %v255
    %1005 = vmatpush.msra.mxu0 %v254
    %1006 = vmatpush.msra.mxu0 %v253
    %1007 = vmatpush.msra.mxu0 %v252
    %1008 = vmatpush.msra.mxu0 %v251
    %1009 = vmatpush.msra.mxu0 %v250
    %1010 = vmatpush.msra.mxu0 %v249
    %1011 = vmatpush.msra.mxu0 %v248
    %1012 = vmatpush.msra.mxu0 %v247
    %1013 = vmatmul.f32.gmra.mxu0 %v935
    %v1014 = vpop.f32.mrf.mxu0
    %v1015 = vadd.f32 %v995, %v1014
    %1016 = vdwg.mxu0
    %v1017 = vtanh.pop %v1015
    %1018 = vmatpush.msra.mxu0 %v389
    %1019 = vmatpush.msra.mxu0 %v388
    %1020 = vmatpush.msra.mxu0 %v387
    %1021 = vmatpush.msra.mxu0 %v386
    %1022 = vmatpush.msra.mxu0 %v385
    %1023 = vmatpush.msra.mxu0 %v384
    %1024 = vmatpush.msra.mxu0 %v383
    %1025 = vmatpush.msra.mxu0 %v382
    %1026 = vmatpush.msra.mxu0 %v381
    %1027 = vmatpush.msra.mxu0 %v380
    %1028 = vmatpush.msra.mxu0 %v379
    %1029 = vmatpush.msra.mxu0 %v378
    %1030 = vmatpush.msra.mxu0 %v377
    %1031 = vmatpush.msra.mxu0 %v376
    %1032 = vmatpush.msra.mxu0 %v375
    %1033 = vmatpush.msra.mxu0 %v374
    %1034 = vmatmul.f32.gmra.mxu0 %v935
    %v1035 = vpop.f32.mrf.mxu0
    %v1036 = vadd.f32 %v409, %v1035
    %1037 = vdwg.mxu0
    %1038 = vmatpush.msra.mxu0 %v405
    %1039 = vmatpush.msra.mxu0 %v404
    %1040 = vmatpush.msra.mxu0 %v403
    %1041 = vmatpush.msra.mxu0 %v402
    %1042 = vmatpush.msra.mxu0 %v401
    %1043 = vmatpush.msra.mxu0 %v400
    %1044 = vmatpush.msra.mxu0 %v399
    %1045 = vmatpush.msra.mxu0 %v398
    %1046 = vmatpush.msra.mxu0 %v397
    %1047 = vmatpush.msra.mxu0 %v396
    %1048 = vmatpush.msra.mxu0 %v395
    %1049 = vmatpush.msra.mxu0 %v394
    %1050 = vmatpush.msra.mxu0 %v393
    %1051 = vmatpush.msra.mxu0 %v392
    %1052 = vmatpush.msra.mxu0 %v391
    %1053 = vmatpush.msra.mxu0 %v390
    %1054 = vmatmul.f32.gmra.mxu0 %v976
    %v1055 = vpop.f32.mrf.mxu0
    %v1056 = vadd.f32 %v1036, %v1055
    %1057 = vdwg.mxu0
    %v1058 = vtanh.pop %v1056
    %1059 = vmatpush.msra.mxu0 %v389
    %1060 = vmatpush.msra.mxu0 %v388
    %1061 = vmatpush.msra.mxu0 %v387
    %1062 = vmatpush.msra.mxu0 %v386
    %1063 = vmatpush.msra.mxu0 %v385
    %1064 = vmatpush.msra.mxu0 %v384
    %1065 = vmatpush.msra.mxu0 %v383
    %1066 = vmatpush.msra.mxu0 %v382
    %1067 = vmatpush.msra.mxu0 %v381
    %1068 = vmatpush.msra.mxu0 %v380
    %1069 = vmatpush.msra.mxu0 %v379
    %1070 = vmatpush.msra.mxu0 %v378
    %1071 = vmatpush.msra.mxu0 %v377
    %1072 = vmatpush.msra.mxu0 %v376
    %1073 = vmatpush.msra.mxu0 %v375
    %1074 = vmatpush.msra.mxu0 %v374
    %1075 = vmatmul.f32.gmra.mxu0 %v1017
    %v1076 = vpop.f32.mrf.mxu0
    %v1077 = vadd.f32 %v409, %v1076
    %1078 = vdwg.mxu0
    %1079 = vmatpush.msra.mxu0 %v405
    %1080 = vmatpush.msra.mxu0 %v404
    %1081 = vmatpush.msra.mxu0 %v403
    %1082 = vmatpush.msra.mxu0 %v402
    %1083 = vmatpush.msra.mxu0 %v401
    %1084 = vmatpush.msra.mxu0 %v400
    %1085 = vmatpush.msra.mxu0 %v399
    %1086 = vmatpush.msra.mxu0 %v398
    %1087 = vmatpush.msra.mxu0 %v397
    %1088 = vmatpush.msra.mxu0 %v396
    %1089 = vmatpush.msra.mxu0 %v395
    %1090 = vmatpush.msra.mxu0 %v394
    %1091 = vmatpush.msra.mxu0 %v393
    %1092 = vmatpush.msra.mxu0 %v392
    %1093 = vmatpush.msra.mxu0 %v391
    %1094 = vmatpush.msra.mxu0 %v390
    %1095 = vmatmul.f32.gmra.mxu0 %v1058
    %v1096 = vpop.f32.mrf.mxu0
    %v1097 = vadd.f32 %v1077, %v1096
    %1098 = vdwg.mxu0
    %v1099 = vtanh.pop %v1097
    %v1100 = vld [vmem:[#allocation8] sm:$0xff]
    %v1101 = vld [vmem:[#allocation8 + $0x8] sm:$0xff]
    %v1102 = vld [vmem:[#allocation8 + $0x10] sm:$0xff]
    %v1103 = vld [vmem:[#allocation8 + $0x18] sm:$0xff]
    %v1104 = vld [vmem:[#allocation8 + $0x20] sm:$0xff]
    %v1105 = vld [vmem:[#allocation8 + $0x28] sm:$0xff]
    %v1106 = vld [vmem:[#allocation8 + $0x30] sm:$0xff]
    %v1107 = vld [vmem:[#allocation8 + $0x38] sm:$0xff]
    %v1108 = vld [vmem:[#allocation8 + $0x40] sm:$0xff]
    %v1109 = vld [vmem:[#allocation8 + $0x48] sm:$0xff]
    %v1110 = vld [vmem:[#allocation8 + $0x50] sm:$0xff]
    %v1111 = vld [vmem:[#allocation8 + $0x58] sm:$0xff]
    %v1112 = vld [vmem:[#allocation8 + $0x60] sm:$0xff]
    %v1113 = vld [vmem:[#allocation8 + $0x68] sm:$0xff]
    %v1114 = vld [vmem:[#allocation8 + $0x70] sm:$0xff]
    %v1115 = vld [vmem:[#allocation8 + $0x78] sm:$0xff]
    %v1116 = vld [vmem:[%s6] sm:$0x1]
    %v1118 = vperm.slane %v1116, 0
    %1120 = vmatpush.msra.mxu0 %v1115
    %1121 = vmatpush.msra.mxu0 %v1114
    %1122 = vmatpush.msra.mxu0 %v1113
    %1123 = vmatpush.msra.mxu0 %v1112
    %1124 = vmatpush.msra.mxu0 %v1111
    %1125 = vmatpush.msra.mxu0 %v1110
    %1126 = vmatpush.msra.mxu0 %v1109
    %1127 = vmatpush.msra.mxu0 %v1108
    %1128 = vmatpush.msra.mxu0 %v1107
    %1129 = vmatpush.msra.mxu0 %v1106
    %1130 = vmatpush.msra.mxu0 %v1105
    %1131 = vmatpush.msra.mxu0 %v1104
    %1132 = vmatpush.msra.mxu0 %v1103
    %1133 = vmatpush.msra.mxu0 %v1102
    %1134 = vmatpush.msra.mxu0 %v1101
    %1135 = vmatpush.msra.mxu0 %v1100
    %1136 = vmatmul.f32.gmra.mxu0 %v1099
    %v1137 = vpop.f32.mrf.mxu0
    %v1138 = vadd.f32 %v1118, %v1137
    %1139 = vdwg.mxu0
    %1140 = vst [vmem:[#allocation9] sm:$0xff] %v1138
    // Predicated region
    $region42: #{tpu_custom_call.1} parent=1 // pred_check
      _
    $region43: #{tpu_custom_call.1} parent=1 // pred_check_branch
      %1142 = sbr.rel (0) target = $region45
    $region44: #{tpu_custom_call.1} parent=1 // pred_region
      %1144 = vsyncadd [#allocation5], 0
      %s1146 = sshll.u32 [#allocation9], 4
      %s1147 = int_to_ptr.vmem [resolvable:$true] %s1146
      %s1148 = sshll.u32 %s7, 4
      %s1149 = int_to_ptr.hbm [resolvable:$true] %s1148
      %1151 = dma.vmem_to_hbm [thread:$0]  %s1147, 128, %s1149, [#allocation5]
    $region45: #{tpu_custom_call.1} parent=1 // pred_fallthru
      _
    // Predicated region
    $region46: #{tpu_custom_call.1} parent=1 // pred_check
      _
    $region47: #{tpu_custom_call.1} parent=1 // pred_check_branch
      %1153 = sbr.rel (0) target = $region49
    $region48: #{tpu_custom_call.1} parent=1 // pred_region
      %1155 = dma.done [#allocation5], 128
    $region49: #{tpu_custom_call.1} parent=1 // pred_fallthru
      _
    %1156 = vsyncpa [#allocation4], 1
    %1157 = vsyncpa [#allocation7], 1
    %1158 = vsyncpa [#allocation5], 1

</llo_original>
